<compile_context>
chip_gen: v5e
topology: v5e:2x2
jax: 0.10.0
libtpu: 0.0.40
codegen_flags: <defaults>
</compile_context>

<pallas_src>
import math

import jax
import jax.numpy as jnp
from jax import lax
from jax.experimental import pallas as pl
from jax.experimental.pallas import tpu as pltpu


def encoder_layer_kernel(x_ref,
                         wq_ref, bq_ref, wk_ref, bk_ref, wv_ref, bv_ref,
                         wo_ref, bo_ref,
                         w1_ref, b1_ref, w2_ref, b2_ref,
                         g1_ref, bt1_ref, g2_ref, bt2_ref,
                         out_ref, attn_ref,
                         acc_ref):
    h = pl.program_id(1)
    n_heads = pl.num_programs(1)
    E = wq_ref.shape[-1]
    scale = 1.0 / math.sqrt(E)

    x_bf = x_ref[0].astype(jnp.bfloat16)                       # (L, D) bf16 MXU operand

    def head_proj(w_ref, b_ref):
        # (L, D) @ (D, E) -> (L, E), bf16 operands, f32 accumulation, f32 bias add.
        y = jnp.dot(x_bf, w_ref[0].astype(jnp.bfloat16),
                    preferred_element_type=jnp.float32)
        return y + b_ref[0]                                     # (1, E) broadcast

    qh = head_proj(wq_ref, bq_ref)                              # (L, E) f32
    kh = head_proj(wk_ref, bk_ref)
    vh = head_proj(wv_ref, bv_ref)

    # scores: contract the E axis of q and k directly (no explicit transpose).
    s = lax.dot_general(qh.astype(jnp.bfloat16), kh.astype(jnp.bfloat16),
                        (((1,), (1,)), ((), ())),
                        preferred_element_type=jnp.float32) * scale      # (L, L) f32

    # numerically-stable softmax; divide replaced by EUP approximate reciprocal.
    m = jnp.max(s, axis=-1, keepdims=True)
    e = jnp.exp(s - m)
    denom = jnp.sum(e, axis=-1, keepdims=True)
    a = e * pl.reciprocal(denom, approx=True)                   # (L, L) f32

    attn_ref[0, 0] = a.astype(attn_ref.dtype)                   # per-head (L, L) tile only

    # context for this head, then fold through this head's slice of the output projection.
    ctx = jnp.dot(a.astype(jnp.bfloat16), vh.astype(jnp.bfloat16),
                  preferred_element_type=jnp.float32)           # (L, E) f32
    head_out = jnp.dot(ctx.astype(jnp.bfloat16), wo_ref[0].astype(jnp.bfloat16),
                       preferred_element_type=jnp.float32)      # (L, D) f32

    @pl.when(h == 0)
    def _():
        acc_ref[...] = jnp.zeros_like(acc_ref)

    acc_ref[...] += head_out

    @pl.when(h == n_heads - 1)
    def _():
        def layer_norm(z, g_ref, b_ref, eps=1e-5):
            mu = jnp.mean(z, axis=-1, keepdims=True)
            var = jnp.mean(jnp.square(z - mu), axis=-1, keepdims=True)
            return (z - mu) * lax.rsqrt(var + eps) * g_ref[...] + b_ref[...]

        x_f32 = x_ref[0].astype(jnp.float32)
        new_x = acc_ref[...] + bo_ref[...]                      # out-proj bias once

        x1 = layer_norm(x_f32 + new_x, g1_ref, bt1_ref)         # norm1(x + attn)

        # pointwise-conv FFN (Conv1d kernel_size=1 == per-position Linear), bf16 MXU, f32 accum.
        y = jnp.dot(x1.astype(jnp.bfloat16), w1_ref[...].astype(jnp.bfloat16),
                    preferred_element_type=jnp.float32) + b1_ref[...]
        y = jnp.maximum(y, 0.0)                                 # relu
        y = jnp.dot(y.astype(jnp.bfloat16), w2_ref[...].astype(jnp.bfloat16),
                    preferred_element_type=jnp.float32) + b2_ref[...]

        out = layer_norm(x1 + y, g2_ref, bt2_ref)               # norm2(x + y)
        out_ref[0] = out.astype(out_ref.dtype)


def encoder_layer(x, params, n_heads):
    B, L, D = x.shape
    E = D // n_heads
    d_ff = params['w1'].shape[0]
    bf16, f32 = jnp.bfloat16, jnp.float32

    # ---- host-side weight preprocessing (torch layout -> (in, out), head-split, bf16) ----------
    def qkv_w(w):   # torch (D_out, D_in) -> (H, D_in, E)
        return jnp.transpose(w, (1, 0)).reshape(D, n_heads, E).transpose(1, 0, 2).astype(bf16)

    def qkv_b(b):   # (1, D_out) -> (H, 1, E)
        return b.reshape(n_heads, 1, E).astype(f32)

    wq_h, wk_h, wv_h = qkv_w(params['wq']), qkv_w(params['wk']), qkv_w(params['wv'])
    bq_h, bk_h, bv_h = qkv_b(params['bq']), qkv_b(params['bk']), qkv_b(params['bv'])
    wo_h = jnp.transpose(params['wo'], (1, 0)).reshape(n_heads, E, D).astype(bf16)
    bo = params['bo'].astype(f32)
    w1 = jnp.transpose(params['w1'], (1, 0)).astype(bf16)       # (D, d_ff)
    w2 = jnp.transpose(params['w2'], (1, 0)).astype(bf16)       # (d_ff, D)
    b1 = params['b1'].astype(f32)
    b2 = params['b2'].astype(f32)
    g1, bt1 = params['g1'].astype(f32), params['bt1'].astype(f32)
    g2, bt2 = params['g2'].astype(f32), params['bt2'].astype(f32)

    weights = [wq_h, bq_h, wk_h, bk_h, wv_h, bv_h, wo_h, bo,
               w1, b1, w2, b2, g1, bt1, g2, bt2]

    in_specs = [
        pl.BlockSpec((1, L, D), lambda b, h: (b, 0, 0)),        # x
        pl.BlockSpec((1, D, E), lambda b, h: (h, 0, 0)),        # wq (per-head slab)
        pl.BlockSpec((1, 1, E), lambda b, h: (h, 0, 0)),        # bq
        pl.BlockSpec((1, D, E), lambda b, h: (h, 0, 0)),        # wk
        pl.BlockSpec((1, 1, E), lambda b, h: (h, 0, 0)),        # bk
        pl.BlockSpec((1, D, E), lambda b, h: (h, 0, 0)),        # wv
        pl.BlockSpec((1, 1, E), lambda b, h: (h, 0, 0)),        # bv
        pl.BlockSpec((1, E, D), lambda b, h: (h, 0, 0)),        # wo (per-head slab)
        pl.BlockSpec((1, D), lambda b, h: (0, 0)),              # bo
        pl.BlockSpec((D, d_ff), lambda b, h: (0, 0)),           # w1
        pl.BlockSpec((1, d_ff), lambda b, h: (0, 0)),           # b1
        pl.BlockSpec((d_ff, D), lambda b, h: (0, 0)),           # w2
        pl.BlockSpec((1, D), lambda b, h: (0, 0)),              # b2
        pl.BlockSpec((1, D), lambda b, h: (0, 0)),              # g1
        pl.BlockSpec((1, D), lambda b, h: (0, 0)),              # bt1
        pl.BlockSpec((1, D), lambda b, h: (0, 0)),              # g2
        pl.BlockSpec((1, D), lambda b, h: (0, 0)),              # bt2
    ]

    out_specs = [pl.BlockSpec((1, L, D), lambda b, h: (b, 0, 0)),
                 pl.BlockSpec((1, 1, L, L), lambda b, h: (b, h, 0, 0))]
    out_shape = [jax.ShapeDtypeStruct((B, L, D), x.dtype),
                 jax.ShapeDtypeStruct((B, n_heads, L, L), jnp.float32)]

    # ---- explicit VMEM budget (double-buffered blocks + scratch + temporaries headroom) --------
    itemsize = x.dtype.itemsize
    est = (2 * L * D * itemsize            # x block
           + 2 * L * D * itemsize          # out block
           + 2 * L * L * 4                 # per-head attn block
           + 2 * 3 * (D * E * 2 + E * 4)   # per-head q/k/v weights (bf16) + biases
           + 2 * E * D * 2                 # per-head out-proj slab
           + 2 * (D * d_ff + d_ff * D)     # FFN weights (bf16)
           + (8 * D + d_ff) * 4            # biases / LN params
           + L * D * 4                     # accumulator scratch
           + 3 * L * max(D, d_ff) * 4)     # in-kernel temporaries headroom
    vmem_limit = int(min(64 * 1024 * 1024, max(32 * 1024 * 1024, 2 * est)))

    return pl.pallas_call(
        encoder_layer_kernel,
        grid=(B, n_heads),
        in_specs=in_specs,
        out_specs=out_specs,
        out_shape=out_shape,
        scratch_shapes=[pltpu.VMEM((L, D), jnp.float32)],
        compiler_params=pltpu.CompilerParams(
            dimension_semantics=("parallel", "arbitrary"),
            vmem_limit_bytes=vmem_limit),
    )(x, *weights)


def init_params(key, d_model, d_ff, dtype=jnp.float32):
    ks = jax.random.split(key, 8)
    def w(k, shape):
        return (jax.random.normal(k, shape, dtype) * 0.02).astype(dtype)
    zeros = lambda n: jnp.zeros((1, n), dtype)
    ones = lambda n: jnp.ones((1, n), dtype)
    return {
        # attention projections (torch Linear weight layout: (out, in))
        'wq': w(ks[0], (d_model, d_model)), 'bq': zeros(d_model),
        'wk': w(ks[1], (d_model, d_model)), 'bk': zeros(d_model),
        'wv': w(ks[2], (d_model, d_model)), 'bv': zeros(d_model),
        'wo': w(ks[3], (d_model, d_model)), 'bo': zeros(d_model),
        # conv1: (d_ff, d_model, 1) squeezed -> (d_ff, d_model); conv2 likewise
        'w1': w(ks[4], (d_ff, d_model)), 'b1': zeros(d_ff),
        'w2': w(ks[5], (d_model, d_ff)), 'b2': zeros(d_model),
        # LayerNorms
        'g1': ones(d_model), 'bt1': zeros(d_model),
        'g2': ones(d_model), 'bt2': zeros(d_model),
    }


def reference(x, p, n_heads):
    """Pure-JAX f32 reference of the same forward pass (eval mode, no mask)."""
    B, L, D = x.shape
    E = D // n_heads
    lin = lambda z, w, b: z @ w.T + b
    q = lin(x, p['wq'], p['bq']).reshape(B, L, n_heads, E)
    k = lin(x, p['wk'], p['bk']).reshape(B, L, n_heads, E)
    v = lin(x, p['wv'], p['bv']).reshape(B, L, n_heads, E)
    s = jnp.einsum('blhe,bshe->bhls', q, k) / math.sqrt(E)
    a = jax.nn.softmax(s, axis=-1)
    o = jnp.einsum('bhls,bshe->blhe', a, v).reshape(B, L, D)
    new_x = lin(o, p['wo'], p['bo'])

    def ln(z, g, b, eps=1e-5):
        mu = jnp.mean(z, -1, keepdims=True)
        var = jnp.mean((z - mu) ** 2, -1, keepdims=True)
        return (z - mu) / jnp.sqrt(var + eps) * g + b

    x1 = ln(x + new_x, p['g1'], p['bt1'])
    y = jnp.maximum(lin(x1, p['w1'], p['b1']), 0.0)
    y = lin(y, p['w2'], p['b2'])
    return ln(x1 + y, p['g2'], p['bt2']), a


if __name__ == "__main__":
    B, L, d_model, n_heads = 2, 8, 32, 4
    d_ff = 4 * d_model

    key = jax.random.PRNGKey(0)
    kx, kp = jax.random.split(key)
    x = jax.random.normal(kx, (B, L, d_model), jnp.float32)
    params = init_params(kp, d_model, d_ff)

    out, attn = encoder_layer(x, params, n_heads)
    out = jax.block_until_ready(out)
    attn = jax.block_until_ready(attn)

    ref_out, ref_attn = reference(x, params, n_heads)
    assert out.shape == (B, L, d_model) and attn.shape == (B, n_heads, L, L)
    assert jnp.allclose(out, ref_out, atol=2e-2, rtol=2e-2)
    assert jnp.allclose(attn, ref_attn, atol=2e-2, rtol=2e-2)

    print("KERNEL_OK")
</pallas_src>

<mosaic_0001>
module attributes {stable_mosaic.version = 11 : i64} {
  func.func @encoder_layer_kernel(%arg0: i32, %arg1: i32, %arg2: memref<1x8x32xf32, #tpu.memory_space<vmem>>, %arg3: memref<1x32x8xbf16, #tpu.memory_space<vmem>>, %arg4: memref<1x1x8xf32, #tpu.memory_space<vmem>>, %arg5: memref<1x32x8xbf16, #tpu.memory_space<vmem>>, %arg6: memref<1x1x8xf32, #tpu.memory_space<vmem>>, %arg7: memref<1x32x8xbf16, #tpu.memory_space<vmem>>, %arg8: memref<1x1x8xf32, #tpu.memory_space<vmem>>, %arg9: memref<1x8x32xbf16, #tpu.memory_space<vmem>>, %arg10: memref<1x32xf32, #tpu.memory_space<vmem>>, %arg11: memref<32x128xbf16, #tpu.memory_space<vmem>>, %arg12: memref<1x128xf32, #tpu.memory_space<vmem>>, %arg13: memref<128x32xbf16, #tpu.memory_space<vmem>>, %arg14: memref<1x32xf32, #tpu.memory_space<vmem>>, %arg15: memref<1x32xf32, #tpu.memory_space<vmem>>, %arg16: memref<1x32xf32, #tpu.memory_space<vmem>>, %arg17: memref<1x32xf32, #tpu.memory_space<vmem>>, %arg18: memref<1x32xf32, #tpu.memory_space<vmem>>, %arg19: memref<1x8x32xf32, #tpu.memory_space<vmem>>, %arg20: memref<1x1x8x8xf32, #tpu.memory_space<vmem>>, %arg21: memref<8x32xf32, #tpu.memory_space<vmem>>) attributes {dimension_semantics = [#tpu.dimension_semantics<parallel>, #tpu.dimension_semantics<arbitrary>], iteration_bounds = array<i64: 2, 4>, scalar_prefetch = 0 : i64, scratch_operands = 1 : i64, tpu.core_type = #tpu.core_type<tc>, window_params = [{transform_indices = @transform_0, window_bounds = array<i64: 1, 8, 32>}, {transform_indices = @transform_1, window_bounds = array<i64: 1, 32, 8>}, {transform_indices = @transform_2, window_bounds = array<i64: 1, 1, 8>}, {transform_indices = @transform_3, window_bounds = array<i64: 1, 32, 8>}, {transform_indices = @transform_4, window_bounds = array<i64: 1, 1, 8>}, {transform_indices = @transform_5, window_bounds = array<i64: 1, 32, 8>}, {transform_indices = @transform_6, window_bounds = array<i64: 1, 1, 8>}, {transform_indices = @transform_7, window_bounds = array<i64: 1, 8, 32>}, {pipeline_mode = #tpu.pipeline_mode<synchronous>, transform_indices = @transform_8, window_bounds = array<i64: 1, 32>}, {pipeline_mode = #tpu.pipeline_mode<synchronous>, transform_indices = @transform_9, window_bounds = array<i64: 32, 128>}, {pipeline_mode = #tpu.pipeline_mode<synchronous>, transform_indices = @transform_10, window_bounds = array<i64: 1, 128>}, {pipeline_mode = #tpu.pipeline_mode<synchronous>, transform_indices = @transform_11, window_bounds = array<i64: 128, 32>}, {pipeline_mode = #tpu.pipeline_mode<synchronous>, transform_indices = @transform_12, window_bounds = array<i64: 1, 32>}, {pipeline_mode = #tpu.pipeline_mode<synchronous>, transform_indices = @transform_13, window_bounds = array<i64: 1, 32>}, {pipeline_mode = #tpu.pipeline_mode<synchronous>, transform_indices = @transform_14, window_bounds = array<i64: 1, 32>}, {pipeline_mode = #tpu.pipeline_mode<synchronous>, transform_indices = @transform_15, window_bounds = array<i64: 1, 32>}, {pipeline_mode = #tpu.pipeline_mode<synchronous>, transform_indices = @transform_16, window_bounds = array<i64: 1, 32>}, {transform_indices = @transform_17, window_bounds = array<i64: 1, 8, 32>}, {transform_indices = @transform_18, window_bounds = array<i64: 1, 1, 8, 8>}]} {
    %c0 = arith.constant 0 : index
    %c0_0 = arith.constant 0 : index
    %c0_1 = arith.constant 0 : index
    %0 = vector.load %arg2[%c0, %c0_0, %c0_1] : memref<1x8x32xf32, #tpu.memory_space<vmem>>, vector<1x8x32xf32>
    %1 = vector.shape_cast %0 : vector<1x8x32xf32> to vector<8x32xf32>
    %2 = arith.truncf %1 : vector<8x32xf32> to vector<8x32xbf16>
    %c0_2 = arith.constant 0 : index
    %c0_3 = arith.constant 0 : index
    %c0_4 = arith.constant 0 : index
    %3 = vector.load %arg3[%c0_2, %c0_3, %c0_4] : memref<1x32x8xbf16, #tpu.memory_space<vmem>>, vector<1x32x8xbf16>
    %4 = vector.shape_cast %3 : vector<1x32x8xbf16> to vector<32x8xbf16>
    %cst = arith.constant dense<0.000000e+00> : vector<8x8xf32>
    %5 = tpu.matmul %2, %4, %cst {dimension_numbers = #tpu.dot_dimension_numbers<[1], [0], [0], [1], [0, 0, 1, 1], [], []>} : vector<8x32xbf16>, vector<32x8xbf16>, vector<8x8xf32> -> vector<8x8xf32>
    %c0_5 = arith.constant 0 : index
    %c0_6 = arith.constant 0 : index
    %c0_7 = arith.constant 0 : index
    %6 = vector.load %arg4[%c0_5, %c0_6, %c0_7] : memref<1x1x8xf32, #tpu.memory_space<vmem>>, vector<1x1x8xf32>
    %7 = vector.shape_cast %6 : vector<1x1x8xf32> to vector<1x8xf32>
    %8 = vector.broadcast %7 : vector<1x8xf32> to vector<8x8xf32>
    %9 = arith.addf %5, %8 : vector<8x8xf32>
    %c0_8 = arith.constant 0 : index
    %c0_9 = arith.constant 0 : index
    %c0_10 = arith.constant 0 : index
    %10 = vector.load %arg5[%c0_8, %c0_9, %c0_10] : memref<1x32x8xbf16, #tpu.memory_space<vmem>>, vector<1x32x8xbf16>
    %11 = vector.shape_cast %10 : vector<1x32x8xbf16> to vector<32x8xbf16>
    %cst_11 = arith.constant dense<0.000000e+00> : vector<8x8xf32>
    %12 = tpu.matmul %2, %11, %cst_11 {dimension_numbers = #tpu.dot_dimension_numbers<[1], [0], [0], [1], [0, 0, 1, 1], [], []>} : vector<8x32xbf16>, vector<32x8xbf16>, vector<8x8xf32> -> vector<8x8xf32>
    %c0_12 = arith.constant 0 : index
    %c0_13 = arith.constant 0 : index
    %c0_14 = arith.constant 0 : index
    %13 = vector.load %arg6[%c0_12, %c0_13, %c0_14] : memref<1x1x8xf32, #tpu.memory_space<vmem>>, vector<1x1x8xf32>
    %14 = vector.shape_cast %13 : vector<1x1x8xf32> to vector<1x8xf32>
    %15 = vector.broadcast %14 : vector<1x8xf32> to vector<8x8xf32>
    %16 = arith.addf %12, %15 : vector<8x8xf32>
    %c0_15 = arith.constant 0 : index
    %c0_16 = arith.constant 0 : index
    %c0_17 = arith.constant 0 : index
    %17 = vector.load %arg7[%c0_15, %c0_16, %c0_17] : memref<1x32x8xbf16, #tpu.memory_space<vmem>>, vector<1x32x8xbf16>
    %18 = vector.shape_cast %17 : vector<1x32x8xbf16> to vector<32x8xbf16>
    %cst_18 = arith.constant dense<0.000000e+00> : vector<8x8xf32>
    %19 = tpu.matmul %2, %18, %cst_18 {dimension_numbers = #tpu.dot_dimension_numbers<[1], [0], [0], [1], [0, 0, 1, 1], [], []>} : vector<8x32xbf16>, vector<32x8xbf16>, vector<8x8xf32> -> vector<8x8xf32>
    %c0_19 = arith.constant 0 : index
    %c0_20 = arith.constant 0 : index
    %c0_21 = arith.constant 0 : index
    %20 = vector.load %arg8[%c0_19, %c0_20, %c0_21] : memref<1x1x8xf32, #tpu.memory_space<vmem>>, vector<1x1x8xf32>
    %21 = vector.shape_cast %20 : vector<1x1x8xf32> to vector<1x8xf32>
    %22 = vector.broadcast %21 : vector<1x8xf32> to vector<8x8xf32>
    %23 = arith.addf %19, %22 : vector<8x8xf32>
    %24 = arith.truncf %9 : vector<8x8xf32> to vector<8x8xbf16>
    %25 = arith.truncf %16 : vector<8x8xf32> to vector<8x8xbf16>
    %cst_22 = arith.constant dense<0.000000e+00> : vector<8x8xf32>
    %26 = tpu.matmul %24, %25, %cst_22 {dimension_numbers = #tpu.dot_dimension_numbers<[1], [1], [0], [0], [0, 0, 1, 0], [], []>} : vector<8x8xbf16>, vector<8x8xbf16>, vector<8x8xf32> -> vector<8x8xf32>
    %cst_23 = arith.constant 0.353553385 : f32
    %27 = vector.broadcast %cst_23 : f32 to vector<8x8xf32>
    %28 = arith.mulf %26, %27 : vector<8x8xf32>
    %cst_24 = arith.constant dense<0xFF800000> : vector<8xf32>
    %29 = vector.multi_reduction <maximumf>, %28, %cst_24 [1] : vector<8x8xf32> to vector<8xf32>
    %30 = vector.shape_cast %29 : vector<8xf32> to vector<8x1xf32>
    %31 = vector.broadcast %30 : vector<8x1xf32> to vector<8x8xf32>
    %32 = arith.subf %28, %31 : vector<8x8xf32>
    %33 = math.exp %32 : vector<8x8xf32>
    %cst_25 = arith.constant dense<0.000000e+00> : vector<8xf32>
    %34 = vector.multi_reduction <add>, %33, %cst_25 [1] : vector<8x8xf32> to vector<8xf32>
    %35 = vector.shape_cast %34 : vector<8xf32> to vector<8x1xf32>
    %36 = tpu.reciprocal %35 {approx = true} : vector<8x1xf32> -> vector<8x1xf32>
    %37 = vector.broadcast %36 : vector<8x1xf32> to vector<8x8xf32>
    %38 = arith.mulf %33, %37 : vector<8x8xf32>
    %c0_26 = arith.constant 0 : index
    %c0_27 = arith.constant 0 : index
    %c0_28 = arith.constant 0 : index
    %c0_29 = arith.constant 0 : index
    %39 = vector.load %arg20[%c0_26, %c0_27, %c0_28, %c0_29] : memref<1x1x8x8xf32, #tpu.memory_space<vmem>>, vector<1x1x8x8xf32>
    %40 = vector.shape_cast %39 : vector<1x1x8x8xf32> to vector<8x8xf32>
    %41 = vector.shape_cast %38 : vector<8x8xf32> to vector<1x1x8x8xf32>
    tpu.vector_store %arg20[%c0_26, %c0_27, %c0_28, %c0_29], %41 {strides = array<i32>} : memref<1x1x8x8xf32, #tpu.memory_space<vmem>>, vector<1x1x8x8xf32>,
    %42 = arith.truncf %38 : vector<8x8xf32> to vector<8x8xbf16>
    %43 = arith.truncf %23 : vector<8x8xf32> to vector<8x8xbf16>
    %cst_30 = arith.constant dense<0.000000e+00> : vector<8x8xf32>
    %44 = tpu.matmul %42, %43, %cst_30 {dimension_numbers = #tpu.dot_dimension_numbers<[1], [0], [0], [1], [0, 0, 1, 1], [], []>} : vector<8x8xbf16>, vector<8x8xbf16>, vector<8x8xf32> -> vector<8x8xf32>
    %45 = arith.truncf %44 : vector<8x8xf32> to vector<8x8xbf16>
    %c0_31 = arith.constant 0 : index
    %c0_32 = arith.constant 0 : index
    %c0_33 = arith.constant 0 : index
    %46 = vector.load %arg9[%c0_31, %c0_32, %c0_33] : memref<1x8x32xbf16, #tpu.memory_space<vmem>>, vector<1x8x32xbf16>
    %47 = vector.shape_cast %46 : vector<1x8x32xbf16> to vector<8x32xbf16>
    %cst_34 = arith.constant dense<0.000000e+00> : vector<8x32xf32>
    %48 = tpu.matmul %45, %47, %cst_34 {dimension_numbers = #tpu.dot_dimension_numbers<[1], [0], [0], [1], [0, 0, 1, 1], [], []>} : vector<8x8xbf16>, vector<8x32xbf16>, vector<8x32xf32> -> vector<8x32xf32>
    %c0_i32 = arith.constant 0 : i32
    %49 = arith.cmpi eq, %arg1, %c0_i32 : i32
    %50 = arith.extui %49 : i1 to i32
    %c0_i32_35 = arith.constant 0 : i32
    %51 = arith.cmpi ne, %50, %c0_i32_35 : i32
    scf.if %51 {
      %cst_41 = arith.constant 0.000000e+00 : f32
      %58 = vector.broadcast %cst_41 : f32 to vector<8x32xf32>
      %c0_42 = arith.constant 0 : index
      %c0_43 = arith.constant 0 : index
      %59 = vector.load %arg21[%c0_42, %c0_43] : memref<8x32xf32, #tpu.memory_space<vmem>>, vector<8x32xf32>
      tpu.vector_store %arg21[%c0_42, %c0_43], %58 {strides = array<i32>} : memref<8x32xf32, #tpu.memory_space<vmem>>, vector<8x32xf32>,
    } else {
    }
    %c0_36 = arith.constant 0 : index
    %c0_37 = arith.constant 0 : index
    %52 = vector.load %arg21[%c0_36, %c0_37] : memref<8x32xf32, #tpu.memory_space<vmem>>, vector<8x32xf32>
    %53 = arith.addf %52, %48 : vector<8x32xf32>
    %c0_38 = arith.constant 0 : index
    %c0_39 = arith.constant 0 : index
    %54 = vector.load %arg21[%c0_38, %c0_39] : memref<8x32xf32, #tpu.memory_space<vmem>>, vector<8x32xf32>
    tpu.vector_store %arg21[%c0_38, %c0_39], %53 {strides = array<i32>} : memref<8x32xf32, #tpu.memory_space<vmem>>, vector<8x32xf32>,
    %c3_i32 = arith.constant 3 : i32
    %55 = arith.cmpi eq, %arg1, %c3_i32 : i32
    %56 = arith.extui %55 : i1 to i32
    %c0_i32_40 = arith.constant 0 : i32
    %57 = arith.cmpi ne, %56, %c0_i32_40 : i32
    scf.if %57 {
      %c0_41 = arith.constant 0 : index
      %c0_42 = arith.constant 0 : index
      %c0_43 = arith.constant 0 : index
      %58 = vector.load %arg2[%c0_41, %c0_42, %c0_43] : memref<1x8x32xf32, #tpu.memory_space<vmem>>, vector<1x8x32xf32>
      %59 = vector.shape_cast %58 : vector<1x8x32xf32> to vector<8x32xf32>
      %c0_44 = arith.constant 0 : index
      %c0_45 = arith.constant 0 : index
      %60 = vector.load %arg21[%c0_44, %c0_45] : memref<8x32xf32, #tpu.memory_space<vmem>>, vector<8x32xf32>
      %c0_46 = arith.constant 0 : index
      %c0_47 = arith.constant 0 : index
      %61 = vector.load %arg10[%c0_46, %c0_47] : memref<1x32xf32, #tpu.memory_space<vmem>>, vector<1x32xf32>
      %62 = vector.broadcast %61 : vector<1x32xf32> to vector<8x32xf32>
      %63 = arith.addf %60, %62 : vector<8x32xf32>
      %64 = arith.addf %59, %63 : vector<8x32xf32>
      %cst_48 = arith.constant dense<0.000000e+00> : vector<8xf32>
      %65 = vector.multi_reduction <add>, %64, %cst_48 [1] : vector<8x32xf32> to vector<8xf32>
      %66 = vector.shape_cast %65 : vector<8xf32> to vector<8x1xf32>
      %cst_49 = arith.constant 3.200000e+01 : f32
      %67 = vector.broadcast %cst_49 : f32 to vector<8x1xf32>
      %68 = arith.divf %66, %67 : vector<8x1xf32>
      %69 = vector.broadcast %68 : vector<8x1xf32> to vector<8x32xf32>
      %70 = arith.subf %64, %69 : vector<8x32xf32>
      %71 = arith.mulf %70, %70 : vector<8x32xf32>
      %cst_50 = arith.constant dense<0.000000e+00> : vector<8xf32>
      %72 = vector.multi_reduction <add>, %71, %cst_50 [1] : vector<8x32xf32> to vector<8xf32>
      %73 = vector.shape_cast %72 : vector<8xf32> to vector<8x1xf32>
      %cst_51 = arith.constant 3.200000e+01 : f32
      %74 = vector.broadcast %cst_51 : f32 to vector<8x1xf32>
      %75 = arith.divf %73, %74 : vector<8x1xf32>
      %76 = vector.broadcast %68 : vector<8x1xf32> to vector<8x32xf32>
      %77 = arith.subf %64, %76 : vector<8x32xf32>
      %cst_52 = arith.constant 9.99999974E-6 : f32
      %78 = vector.broadcast %cst_52 : f32 to vector<8x1xf32>
      %79 = arith.addf %75, %78 : vector<8x1xf32>
      %80 = math.rsqrt %79 : vector<8x1xf32>
      %81 = vector.broadcast %80 : vector<8x1xf32> to vector<8x32xf32>
      %82 = arith.mulf %77, %81 : vector<8x32xf32>
      %c0_53 = arith.constant 0 : index
      %c0_54 = arith.constant 0 : index
      %83 = vector.load %arg15[%c0_53, %c0_54] : memref<1x32xf32, #tpu.memory_space<vmem>>, vector<1x32xf32>
      %84 = vector.broadcast %83 : vector<1x32xf32> to vector<8x32xf32>
      %85 = arith.mulf %82, %84 : vector<8x32xf32>
      %c0_55 = arith.constant 0 : index
      %c0_56 = arith.constant 0 : index
      %86 = vector.load %arg16[%c0_55, %c0_56] : memref<1x32xf32, #tpu.memory_space<vmem>>, vector<1x32xf32>
      %87 = vector.broadcast %86 : vector<1x32xf32> to vector<8x32xf32>
      %88 = arith.addf %85, %87 : vector<8x32xf32>
      %89 = arith.truncf %88 : vector<8x32xf32> to vector<8x32xbf16>
      %c0_57 = arith.constant 0 : index
      %c0_58 = arith.constant 0 : index
      %90 = vector.load %arg11[%c0_57, %c0_58] : memref<32x128xbf16, #tpu.memory_space<vmem>>, vector<32x128xbf16>
      %cst_59 = arith.constant dense<0.000000e+00> : vector<8x128xf32>
      %91 = tpu.matmul %89, %90, %cst_59 {dimension_numbers = #tpu.dot_dimension_numbers<[1], [0], [0], [1], [0, 0, 1, 1], [], []>} : vector<8x32xbf16>, vector<32x128xbf16>, vector<8x128xf32> -> vector<8x128xf32>
      %c0_60 = arith.constant 0 : index
      %c0_61 = arith.constant 0 : index
      %92 = vector.load %arg12[%c0_60, %c0_61] : memref<1x128xf32, #tpu.memory_space<vmem>>, vector<1x128xf32>
      %93 = vector.broadcast %92 : vector<1x128xf32> to vector<8x128xf32>
      %94 = arith.addf %91, %93 : vector<8x128xf32>
      %cst_62 = arith.constant 0.000000e+00 : f32
      %95 = vector.broadcast %cst_62 : f32 to vector<8x128xf32>
      %96 = arith.maximumf %94, %95 : vector<8x128xf32>
      %97 = arith.truncf %96 : vector<8x128xf32> to vector<8x128xbf16>
      %c0_63 = arith.constant 0 : index
      %c0_64 = arith.constant 0 : index
      %98 = vector.load %arg13[%c0_63, %c0_64] : memref<128x32xbf16, #tpu.memory_space<vmem>>, vector<128x32xbf16>
      %cst_65 = arith.constant dense<0.000000e+00> : vector<8x32xf32>
      %99 = tpu.matmul %97, %98, %cst_65 {dimension_numbers = #tpu.dot_dimension_numbers<[1], [0], [0], [1], [0, 0, 1, 1], [], []>} : vector<8x128xbf16>, vector<128x32xbf16>, vector<8x32xf32> -> vector<8x32xf32>
      %c0_66 = arith.constant 0 : index
      %c0_67 = arith.constant 0 : index
      %100 = vector.load %arg14[%c0_66, %c0_67] : memref<1x32xf32, #tpu.memory_space<vmem>>, vector<1x32xf32>
      %101 = vector.broadcast %100 : vector<1x32xf32> to vector<8x32xf32>
      %102 = arith.addf %99, %101 : vector<8x32xf32>
      %103 = arith.addf %88, %102 : vector<8x32xf32>
      %cst_68 = arith.constant dense<0.000000e+00> : vector<8xf32>
      %104 = vector.multi_reduction <add>, %103, %cst_68 [1] : vector<8x32xf32> to vector<8xf32>
      %105 = vector.shape_cast %104 : vector<8xf32> to vector<8x1xf32>
      %cst_69 = arith.constant 3.200000e+01 : f32
      %106 = vector.broadcast %cst_69 : f32 to vector<8x1xf32>
      %107 = arith.divf %105, %106 : vector<8x1xf32>
      %108 = vector.broadcast %107 : vector<8x1xf32> to vector<8x32xf32>
      %109 = arith.subf %103, %108 : vector<8x32xf32>
      %110 = arith.mulf %109, %109 : vector<8x32xf32>
      %cst_70 = arith.constant dense<0.000000e+00> : vector<8xf32>
      %111 = vector.multi_reduction <add>, %110, %cst_70 [1] : vector<8x32xf32> to vector<8xf32>
      %112 = vector.shape_cast %111 : vector<8xf32> to vector<8x1xf32>
      %cst_71 = arith.constant 3.200000e+01 : f32
      %113 = vector.broadcast %cst_71 : f32 to vector<8x1xf32>
      %114 = arith.divf %112, %113 : vector<8x1xf32>
      %115 = vector.broadcast %107 : vector<8x1xf32> to vector<8x32xf32>
      %116 = arith.subf %103, %115 : vector<8x32xf32>
      %cst_72 = arith.constant 9.99999974E-6 : f32
      %117 = vector.broadcast %cst_72 : f32 to vector<8x1xf32>
      %118 = arith.addf %114, %117 : vector<8x1xf32>
      %119 = math.rsqrt %118 : vector<8x1xf32>
      %120 = vector.broadcast %119 : vector<8x1xf32> to vector<8x32xf32>
      %121 = arith.mulf %116, %120 : vector<8x32xf32>
      %c0_73 = arith.constant 0 : index
      %c0_74 = arith.constant 0 : index
      %122 = vector.load %arg17[%c0_73, %c0_74] : memref<1x32xf32, #tpu.memory_space<vmem>>, vector<1x32xf32>
      %123 = vector.broadcast %122 : vector<1x32xf32> to vector<8x32xf32>
      %124 = arith.mulf %121, %123 : vector<8x32xf32>
      %c0_75 = arith.constant 0 : index
      %c0_76 = arith.constant 0 : index
      %125 = vector.load %arg18[%c0_75, %c0_76] : memref<1x32xf32, #tpu.memory_space<vmem>>, vector<1x32xf32>
      %126 = vector.broadcast %125 : vector<1x32xf32> to vector<8x32xf32>
      %127 = arith.addf %124, %126 : vector<8x32xf32>
      %c0_77 = arith.constant 0 : index
      %c0_78 = arith.constant 0 : index
      %c0_79 = arith.constant 0 : index
      %128 = vector.load %arg19[%c0_77, %c0_78, %c0_79] : memref<1x8x32xf32, #tpu.memory_space<vmem>>, vector<1x8x32xf32>
      %129 = vector.shape_cast %128 : vector<1x8x32xf32> to vector<8x32xf32>
      %130 = vector.shape_cast %127 : vector<8x32xf32> to vector<1x8x32xf32>
      tpu.vector_store %arg19[%c0_77, %c0_78, %c0_79], %130 {strides = array<i32>} : memref<1x8x32xf32, #tpu.memory_space<vmem>>, vector<1x8x32xf32>,
    } else {
    }
    return
  }
  func.func @transform_0(%arg0: i32, %arg1: i32) -> (i32, i32, i32) {
    %c0_i32 = arith.constant 0 : i32
    %c0_i32_0 = arith.constant 0 : i32
    %c0_i32_1 = arith.constant 0 : i32
    return %arg0, %c0_i32, %c0_i32_0 : i32, i32, i32
  }
  func.func @transform_1(%arg0: i32, %arg1: i32) -> (i32, i32, i32) {
    %c0_i32 = arith.constant 0 : i32
    %c0_i32_0 = arith.constant 0 : i32
    %c0_i32_1 = arith.constant 0 : i32
    return %arg1, %c0_i32, %c0_i32_0 : i32, i32, i32
  }
  func.func @transform_2(%arg0: i32, %arg1: i32) -> (i32, i32, i32) {
    %c0_i32 = arith.constant 0 : i32
    %c0_i32_0 = arith.constant 0 : i32
    %c0_i32_1 = arith.constant 0 : i32
    return %arg1, %c0_i32, %c0_i32_0 : i32, i32, i32
  }
  func.func @transform_3(%arg0: i32, %arg1: i32) -> (i32, i32, i32) {
    %c0_i32 = arith.constant 0 : i32
    %c0_i32_0 = arith.constant 0 : i32
    %c0_i32_1 = arith.constant 0 : i32
    return %arg1, %c0_i32, %c0_i32_0 : i32, i32, i32
  }
  func.func @transform_4(%arg0: i32, %arg1: i32) -> (i32, i32, i32) {
    %c0_i32 = arith.constant 0 : i32
    %c0_i32_0 = arith.constant 0 : i32
    %c0_i32_1 = arith.constant 0 : i32
    return %arg1, %c0_i32, %c0_i32_0 : i32, i32, i32
  }
  func.func @transform_5(%arg0: i32, %arg1: i32) -> (i32, i32, i32) {
    %c0_i32 = arith.constant 0 : i32
    %c0_i32_0 = arith.constant 0 : i32
    %c0_i32_1 = arith.constant 0 : i32
    return %arg1, %c0_i32, %c0_i32_0 : i32, i32, i32
  }
  func.func @transform_6(%arg0: i32, %arg1: i32) -> (i32, i32, i32) {
    %c0_i32 = arith.constant 0 : i32
    %c0_i32_0 = arith.constant 0 : i32
    %c0_i32_1 = arith.constant 0 : i32
    return %arg1, %c0_i32, %c0_i32_0 : i32, i32, i32
  }
  func.func @transform_7(%arg0: i32, %arg1: i32) -> (i32, i32, i32) {
    %c0_i32 = arith.constant 0 : i32
    %c0_i32_0 = arith.constant 0 : i32
    %c0_i32_1 = arith.constant 0 : i32
    return %arg1, %c0_i32, %c0_i32_0 : i32, i32, i32
  }
  func.func @transform_8(%arg0: i32, %arg1: i32) -> (i32, i32) {
    %c0_i32 = arith.constant 0 : i32
    %c0_i32_0 = arith.constant 0 : i32
    %c0_i32_1 = arith.constant 0 : i32
    return %c0_i32, %c0_i32_0 : i32, i32
  }
  func.func @transform_9(%arg0: i32, %arg1: i32) -> (i32, i32) {
    %c0_i32 = arith.constant 0 : i32
    %c0_i32_0 = arith.constant 0 : i32
    %c0_i32_1 = arith.constant 0 : i32
    return %c0_i32, %c0_i32_0 : i32, i32
  }
  func.func @transform_10(%arg0: i32, %arg1: i32) -> (i32, i32) {
    %c0_i32 = arith.constant 0 : i32
    %c0_i32_0 = arith.constant 0 : i32
    %c0_i32_1 = arith.constant 0 : i32
    return %c0_i32, %c0_i32_0 : i32, i32
  }
  func.func @transform_11(%arg0: i32, %arg1: i32) -> (i32, i32) {
    %c0_i32 = arith.constant 0 : i32
    %c0_i32_0 = arith.constant 0 : i32
    %c0_i32_1 = arith.constant 0 : i32
    return %c0_i32, %c0_i32_0 : i32, i32
  }
  func.func @transform_12(%arg0: i32, %arg1: i32) -> (i32, i32) {
    %c0_i32 = arith.constant 0 : i32
    %c0_i32_0 = arith.constant 0 : i32
    %c0_i32_1 = arith.constant 0 : i32
    return %c0_i32, %c0_i32_0 : i32, i32
  }
  func.func @transform_13(%arg0: i32, %arg1: i32) -> (i32, i32) {
    %c0_i32 = arith.constant 0 : i32
    %c0_i32_0 = arith.constant 0 : i32
    %c0_i32_1 = arith.constant 0 : i32
    return %c0_i32, %c0_i32_0 : i32, i32
  }
  func.func @transform_14(%arg0: i32, %arg1: i32) -> (i32, i32) {
    %c0_i32 = arith.constant 0 : i32
    %c0_i32_0 = arith.constant 0 : i32
    %c0_i32_1 = arith.constant 0 : i32
    return %c0_i32, %c0_i32_0 : i32, i32
  }
  func.func @transform_15(%arg0: i32, %arg1: i32) -> (i32, i32) {
    %c0_i32 = arith.constant 0 : i32
    %c0_i32_0 = arith.constant 0 : i32
    %c0_i32_1 = arith.constant 0 : i32
    return %c0_i32, %c0_i32_0 : i32, i32
  }
  func.func @transform_16(%arg0: i32, %arg1: i32) -> (i32, i32) {
    %c0_i32 = arith.constant 0 : i32
    %c0_i32_0 = arith.constant 0 : i32
    %c0_i32_1 = arith.constant 0 : i32
    return %c0_i32, %c0_i32_0 : i32, i32
  }
  func.func @transform_17(%arg0: i32, %arg1: i32) -> (i32, i32, i32) {
    %c0_i32 = arith.constant 0 : i32
    %c0_i32_0 = arith.constant 0 : i32
    %c0_i32_1 = arith.constant 0 : i32
    return %arg0, %c0_i32, %c0_i32_0 : i32, i32, i32
  }
  func.func @transform_18(%arg0: i32, %arg1: i32) -> (i32, i32, i32, i32) {
    %c0_i32 = arith.constant 0 : i32
    %c0_i32_0 = arith.constant 0 : i32
    %c0_i32_1 = arith.constant 0 : i32
    return %arg0, %arg1, %c0_i32, %c0_i32_0 : i32, i32, i32, i32
  }
}

</mosaic_0001>

<llo_original>
// kernel: tpu_custom_call.1
$region0: #{tpu_custom_call.1}
  #allocation0 [shape = 'u32[]', space=smem, size = 0x4, offset = 0x4, fixed_abs, tag = 'smem constant byte address 0x4 - core index']
  #allocation1 [shape = 'u32[72,128]{1,0:T(1,128)}', space=vmem, size = 0x9000, scoped, tag = 'internal scratch']
  #allocation2 [shape = 'f32[8,32]{1,0:T(8,128)}', space=vmem, size = 0x1000, scoped, tag = 'scratch operand']
  %s0 = inlined_call_operand.vmem [shape: f32[2,8,32], index: 0, kind: input, shape index: {}]
  %s1 = inlined_call_operand.vmem [shape: bf16[4,32,8], index: 1, kind: input, shape index: {}]
  %s2 = inlined_call_operand.vmem [shape: f32[4,1,8], index: 2, kind: input, shape index: {}]
  %s3 = inlined_call_operand.vmem [shape: bf16[4,32,8], index: 3, kind: input, shape index: {}]
  %s4 = inlined_call_operand.vmem [shape: f32[4,1,8], index: 4, kind: input, shape index: {}]
  %s5 = inlined_call_operand.vmem [shape: bf16[4,32,8], index: 5, kind: input, shape index: {}]
  %s6 = inlined_call_operand.vmem [shape: f32[4,1,8], index: 6, kind: input, shape index: {}]
  %s7 = inlined_call_operand.vmem [shape: bf16[4,8,32], index: 7, kind: input, shape index: {}]
  %s8 = inlined_call_operand.vmem [shape: f32[1,32], index: 8, kind: input, shape index: {}]
  %s9 = inlined_call_operand.vmem [shape: bf16[32,128], index: 9, kind: input, shape index: {}]
  %s10 = inlined_call_operand.vmem [shape: f32[1,128], index: 10, kind: input, shape index: {}]
  %s11 = inlined_call_operand.vmem [shape: bf16[128,32], index: 11, kind: input, shape index: {}]
  %s12 = inlined_call_operand.vmem [shape: f32[1,32], index: 12, kind: input, shape index: {}]
  %s13 = inlined_call_operand.vmem [shape: f32[1,32], index: 13, kind: input, shape index: {}]
  %s14 = inlined_call_operand.vmem [shape: f32[1,32], index: 14, kind: input, shape index: {}]
  %s15 = inlined_call_operand.vmem [shape: f32[1,32], index: 15, kind: input, shape index: {}]
  %s16 = inlined_call_operand.vmem [shape: f32[1,32], index: 16, kind: input, shape index: {}]
  %s17 = inlined_call_operand.hbm [shape: f32[2,8,32], index: 17, kind: output, shape index: {0}]
  %s18 = inlined_call_operand.hbm [shape: f32[2,4,8,8], index: 18, kind: output, shape index: {1}]
  %19 = xla_tuple %s17, %s18
  %s20 = sld [smem:[#allocation0]]
  $region117: #{tpu_custom_call.1} parent=0
    _
  %s22 = ssub.s32 1, %s20
  %s23 = scalar_select 0, %s22, %s20
  $region1: #{tpu_custom_call.1} parent=0
    #allocation3 [shape = 'u8[8192]{0}', space=vmem, size = 0x2000, scoped, tag = 'output window, operand 0']
    #allocation4 [shape = 's32[2]{0}', space=sflag, size = 0x8, scoped, tag = 'scoped memory for tpu_custom_call.1']
    #allocation5 [shape = 'u8[8192]{0}', space=vmem, size = 0x2000, scoped, tag = 'output window, operand 1']
    #allocation6 [shape = 's32[2]{0}', space=sflag, size = 0x8, scoped, tag = 'scoped memory for tpu_custom_call.1']
    %24 = vsyncpa [#allocation4], 0
    %s25 = scalar_lea.sflag [#allocation4], 1
    %26 = vsyncpa %s25, 0
    %27 = vsyncpa [#allocation6], 0
    %s28 = scalar_lea.sflag [#allocation6], 1
    %29 = vsyncpa %s28, 0
    loop: start=0, step=1, limit=10
    $region2: #{tpu_custom_call.1} parent=1 // loop_pre_header
      _
    $region3: #{tpu_custom_call.1} parent=1 // loop_header
      %s31 = sphi 0, %s35
      %p32 = scmp.ge.s32.totalorder %s31, 10
      %s38 = sphi 0, %s50
      %s39 = sphi 0, %s46
      %s40 = sphi 0, %s38
      %s41 = sphi 0, %s39
      %s42 = sphi 0, %s40
      %s43 = sphi 0, %s41
      %s53 = sphi 0, %s55
      %s56 = sphi 0, %s53
      %s57 = sphi 0, %s56
      %s73 = sphi 0, %s57
      %s79 = sphi 0, %s81
      %s82 = sphi 0, %s79
      %s83 = sphi 0, %s82
      %s99 = sphi 0, %s83
      %s105 = sphi 0, %s107
      %s108 = sphi 0, %s105
      %s109 = sphi 0, %s108
      %s125 = sphi 0, %s109
      %s131 = sphi 0, %s133
      %s134 = sphi 0, %s131
      %s135 = sphi 0, %s134
      %s151 = sphi 0, %s135
      %s157 = sphi 0, %s159
      %s160 = sphi 0, %s157
      %s161 = sphi 0, %s160
      %s177 = sphi 0, %s161
      %s183 = sphi 0, %s185
      %s186 = sphi 0, %s183
      %s187 = sphi 0, %s186
      %s203 = sphi 0, %s187
      %s209 = sphi 0, %s211
      %s212 = sphi 0, %s209
      %s213 = sphi 0, %s212
      %s229 = sphi 0, %s213
      %s235 = sphi 0, %s237
      %s238 = sphi 0, %s235
      %s239 = sphi 0, %s238
      %s255 = sphi 0, %s239
      %s259 = sphi 0, %s259
      %s261 = sphi 0, %s259
      %s262 = sphi 0, %s261
      %s276 = sphi 0, %s262
      %s280 = sphi 0, %s280
      %s282 = sphi 0, %s280
      %s283 = sphi 0, %s282
      %s297 = sphi 0, %s283
      %s301 = sphi 0, %s301
      %s303 = sphi 0, %s301
      %s304 = sphi 0, %s303
      %s318 = sphi 0, %s304
      %s322 = sphi 0, %s322
      %s324 = sphi 0, %s322
      %s325 = sphi 0, %s324
      %s339 = sphi 0, %s325
      %s343 = sphi 0, %s343
      %s345 = sphi 0, %s343
      %s346 = sphi 0, %s345
      %s360 = sphi 0, %s346
      %s364 = sphi 0, %s364
      %s366 = sphi 0, %s364
      %s367 = sphi 0, %s366
      %s381 = sphi 0, %s367
      %s385 = sphi 0, %s385
      %s387 = sphi 0, %s385
      %s388 = sphi 0, %s387
      %s402 = sphi 0, %s388
      %s406 = sphi 0, %s406
      %s408 = sphi 0, %s406
      %s409 = sphi 0, %s408
      %s423 = sphi 0, %s409
      %s427 = sphi 0, %s427
      %s429 = sphi 0, %s427
      %s430 = sphi 0, %s429
      %s444 = sphi 0, %s430
      %s450 = sphi 0, %s452
      %s453 = sphi 0, %s450
      %s454 = sphi 0, %s453
      %s470 = sphi 0, %s454
      %s478 = sphi 0, %s480
      %s481 = sphi 0, %s478
      %s482 = sphi 0, %s481
      %s498 = sphi 0, %s482
    $region4: #{tpu_custom_call.1} parent=1 // loop_header_branch
      %34 = sbr.rel (%p32) target = $region8
    $region5: #{tpu_custom_call.1} parent=1 // loop_body
      %s36 = ssub.s32 %s31, 1
      %s37 = ssub.s32 %s31, 2
      %s44 = sadd.s32 1, %s39
      %p45 = scmp.ge.s32.totalorder %s44, 4
      %s46 = scalar_select %p45, 0, %s44
      %s47 = sadd.s32 1, %s38
      %s48 = scalar_select %p45, %s47, %s38
      %p49 = scmp.ge.s32.totalorder %s48, 2
      %s50 = scalar_select %p49, 0, %s48
      %s51 = ssub.s32 %s38, %s50
      %p52 = scmp.eq.s32.totalorder %s51, 0
      %s54 = sadd.s32 %s53, 1
      %s55 = scalar_select %p52, %s53, %s54
      %p58 = pneg %p52
      %p59 = scmp.eq.s32.totalorder %s31, 7
      %p60 = por %p58, %p59
      %p61 = scmp.ne.s32.totalorder %s53, %s56
      %p62 = scmp.eq.s32.totalorder %s31, 0
      %p63 = por %p61, %p62
      %p64 = scmp.ne.s32.totalorder %s53, %s56
      %p65 = scmp.eq.s32.totalorder %s36, 7
      %p66 = por %p64, %p65
      %p67 = scmp.ne.s32.totalorder %s56, %s57
      %p68 = scmp.eq.s32.totalorder %s36, 0
      %p69 = por %p67, %p68
      %p70 = scmp.ne.s32.totalorder %s56, %s57
      %p71 = scmp.eq.s32.totalorder %s37, 7
      %p72 = por %p70, %p71
      %p74 = scmp.ne.s32.totalorder %s57, %s73
      %p75 = scmp.eq.s32.totalorder %s37, 0
      %p76 = por %p74, %p75
      %s77 = ssub.s32 %s39, %s46
      %p78 = scmp.eq.s32.totalorder %s77, 0
      %s80 = sadd.s32 %s79, 1
      %s81 = scalar_select %p78, %s79, %s80
      %p84 = pneg %p78
      %p85 = scmp.eq.s32.totalorder %s31, 7
      %p86 = por %p84, %p85
      %p87 = scmp.ne.s32.totalorder %s79, %s82
      %p88 = scmp.eq.s32.totalorder %s31, 0
      %p89 = por %p87, %p88
      %p90 = scmp.ne.s32.totalorder %s79, %s82
      %p91 = scmp.eq.s32.totalorder %s36, 7
      %p92 = por %p90, %p91
      %p93 = scmp.ne.s32.totalorder %s82, %s83
      %p94 = scmp.eq.s32.totalorder %s36, 0
      %p95 = por %p93, %p94
      %p96 = scmp.ne.s32.totalorder %s82, %s83
      %p97 = scmp.eq.s32.totalorder %s37, 7
      %p98 = por %p96, %p97
      %p100 = scmp.ne.s32.totalorder %s83, %s99
      %p101 = scmp.eq.s32.totalorder %s37, 0
      %p102 = por %p100, %p101
      %s103 = ssub.s32 %s39, %s46
      %p104 = scmp.eq.s32.totalorder %s103, 0
      %s106 = sadd.s32 %s105, 1
      %s107 = scalar_select %p104, %s105, %s106
      %p110 = pneg %p104
      %p111 = scmp.eq.s32.totalorder %s31, 7
      %p112 = por %p110, %p111
      %p113 = scmp.ne.s32.totalorder %s105, %s108
      %p114 = scmp.eq.s32.totalorder %s31, 0
      %p115 = por %p113, %p114
      %p116 = scmp.ne.s32.totalorder %s105, %s108
      %p117 = scmp.eq.s32.totalorder %s36, 7
      %p118 = por %p116, %p117
      %p119 = scmp.ne.s32.totalorder %s108, %s109
      %p120 = scmp.eq.s32.totalorder %s36, 0
      %p121 = por %p119, %p120
      %p122 = scmp.ne.s32.totalorder %s108, %s109
      %p123 = scmp.eq.s32.totalorder %s37, 7
      %p124 = por %p122, %p123
      %p126 = scmp.ne.s32.totalorder %s109, %s125
      %p127 = scmp.eq.s32.totalorder %s37, 0
      %p128 = por %p126, %p127
      %s129 = ssub.s32 %s39, %s46
      %p130 = scmp.eq.s32.totalorder %s129, 0
      %s132 = sadd.s32 %s131, 1
      %s133 = scalar_select %p130, %s131, %s132
      %p136 = pneg %p130
      %p137 = scmp.eq.s32.totalorder %s31, 7
      %p138 = por %p136, %p137
      %p139 = scmp.ne.s32.totalorder %s131, %s134
      %p140 = scmp.eq.s32.totalorder %s31, 0
      %p141 = por %p139, %p140
      %p142 = scmp.ne.s32.totalorder %s131, %s134
      %p143 = scmp.eq.s32.totalorder %s36, 7
      %p144 = por %p142, %p143
      %p145 = scmp.ne.s32.totalorder %s134, %s135
      %p146 = scmp.eq.s32.totalorder %s36, 0
      %p147 = por %p145, %p146
      %p148 = scmp.ne.s32.totalorder %s134, %s135
      %p149 = scmp.eq.s32.totalorder %s37, 7
      %p150 = por %p148, %p149
      %p152 = scmp.ne.s32.totalorder %s135, %s151
      %p153 = scmp.eq.s32.totalorder %s37, 0
      %p154 = por %p152, %p153
      %s155 = ssub.s32 %s39, %s46
      %p156 = scmp.eq.s32.totalorder %s155, 0
      %s158 = sadd.s32 %s157, 1
      %s159 = scalar_select %p156, %s157, %s158
      %p162 = pneg %p156
      %p163 = scmp.eq.s32.totalorder %s31, 7
      %p164 = por %p162, %p163
      %p165 = scmp.ne.s32.totalorder %s157, %s160
      %p166 = scmp.eq.s32.totalorder %s31, 0
      %p167 = por %p165, %p166
      %p168 = scmp.ne.s32.totalorder %s157, %s160
      %p169 = scmp.eq.s32.totalorder %s36, 7
      %p170 = por %p168, %p169
      %p171 = scmp.ne.s32.totalorder %s160, %s161
      %p172 = scmp.eq.s32.totalorder %s36, 0
      %p173 = por %p171, %p172
      %p174 = scmp.ne.s32.totalorder %s160, %s161
      %p175 = scmp.eq.s32.totalorder %s37, 7
      %p176 = por %p174, %p175
      %p178 = scmp.ne.s32.totalorder %s161, %s177
      %p179 = scmp.eq.s32.totalorder %s37, 0
      %p180 = por %p178, %p179
      %s181 = ssub.s32 %s39, %s46
      %p182 = scmp.eq.s32.totalorder %s181, 0
      %s184 = sadd.s32 %s183, 1
      %s185 = scalar_select %p182, %s183, %s184
      %p188 = pneg %p182
      %p189 = scmp.eq.s32.totalorder %s31, 7
      %p190 = por %p188, %p189
      %p191 = scmp.ne.s32.totalorder %s183, %s186
      %p192 = scmp.eq.s32.totalorder %s31, 0
      %p193 = por %p191, %p192
      %p194 = scmp.ne.s32.totalorder %s183, %s186
      %p195 = scmp.eq.s32.totalorder %s36, 7
      %p196 = por %p194, %p195
      %p197 = scmp.ne.s32.totalorder %s186, %s187
      %p198 = scmp.eq.s32.totalorder %s36, 0
      %p199 = por %p197, %p198
      %p200 = scmp.ne.s32.totalorder %s186, %s187
      %p201 = scmp.eq.s32.totalorder %s37, 7
      %p202 = por %p200, %p201
      %p204 = scmp.ne.s32.totalorder %s187, %s203
      %p205 = scmp.eq.s32.totalorder %s37, 0
      %p206 = por %p204, %p205
      %s207 = ssub.s32 %s39, %s46
      %p208 = scmp.eq.s32.totalorder %s207, 0
      %s210 = sadd.s32 %s209, 1
      %s211 = scalar_select %p208, %s209, %s210
      %p214 = pneg %p208
      %p215 = scmp.eq.s32.totalorder %s31, 7
      %p216 = por %p214, %p215
      %p217 = scmp.ne.s32.totalorder %s209, %s212
      %p218 = scmp.eq.s32.totalorder %s31, 0
      %p219 = por %p217, %p218
      %p220 = scmp.ne.s32.totalorder %s209, %s212
      %p221 = scmp.eq.s32.totalorder %s36, 7
      %p222 = por %p220, %p221
      %p223 = scmp.ne.s32.totalorder %s212, %s213
      %p224 = scmp.eq.s32.totalorder %s36, 0
      %p225 = por %p223, %p224
      %p226 = scmp.ne.s32.totalorder %s212, %s213
      %p227 = scmp.eq.s32.totalorder %s37, 7
      %p228 = por %p226, %p227
      %p230 = scmp.ne.s32.totalorder %s213, %s229
      %p231 = scmp.eq.s32.totalorder %s37, 0
      %p232 = por %p230, %p231
      %s233 = ssub.s32 %s39, %s46
      %p234 = scmp.eq.s32.totalorder %s233, 0
      %s236 = sadd.s32 %s235, 1
      %s237 = scalar_select %p234, %s235, %s236
      %p240 = pneg %p234
      %p241 = scmp.eq.s32.totalorder %s31, 7
      %p242 = por %p240, %p241
      %p243 = scmp.ne.s32.totalorder %s235, %s238
      %p244 = scmp.eq.s32.totalorder %s31, 0
      %p245 = por %p243, %p244
      %p246 = scmp.ne.s32.totalorder %s235, %s238
      %p247 = scmp.eq.s32.totalorder %s36, 7
      %p248 = por %p246, %p247
      %p249 = scmp.ne.s32.totalorder %s238, %s239
      %p250 = scmp.eq.s32.totalorder %s36, 0
      %p251 = por %p249, %p250
      %p252 = scmp.ne.s32.totalorder %s238, %s239
      %p253 = scmp.eq.s32.totalorder %s37, 7
      %p254 = por %p252, %p253
      %p256 = scmp.ne.s32.totalorder %s239, %s255
      %p257 = scmp.eq.s32.totalorder %s37, 0
      %p258 = por %p256, %p257
      %s260 = sadd.s32 %s259, 1
      %p263 = scmp.eq.s32.totalorder %s31, 7
      %p264 = scmp.ne.s32.totalorder %s259, %s261
      %p265 = scmp.eq.s32.totalorder %s31, 0
      %p266 = por %p264, %p265
      %p267 = scmp.ne.s32.totalorder %s259, %s261
      %p268 = scmp.eq.s32.totalorder %s36, 7
      %p269 = por %p267, %p268
      %p270 = scmp.ne.s32.totalorder %s261, %s262
      %p271 = scmp.eq.s32.totalorder %s36, 0
      %p272 = por %p270, %p271
      %p273 = scmp.ne.s32.totalorder %s261, %s262
      %p274 = scmp.eq.s32.totalorder %s37, 7
      %p275 = por %p273, %p274
      %p277 = scmp.ne.s32.totalorder %s262, %s276
      %p278 = scmp.eq.s32.totalorder %s37, 0
      %p279 = por %p277, %p278
      %s281 = sadd.s32 %s280, 1
      %p284 = scmp.eq.s32.totalorder %s31, 7
      %p285 = scmp.ne.s32.totalorder %s280, %s282
      %p286 = scmp.eq.s32.totalorder %s31, 0
      %p287 = por %p285, %p286
      %p288 = scmp.ne.s32.totalorder %s280, %s282
      %p289 = scmp.eq.s32.totalorder %s36, 7
      %p290 = por %p288, %p289
      %p291 = scmp.ne.s32.totalorder %s282, %s283
      %p292 = scmp.eq.s32.totalorder %s36, 0
      %p293 = por %p291, %p292
      %p294 = scmp.ne.s32.totalorder %s282, %s283
      %p295 = scmp.eq.s32.totalorder %s37, 7
      %p296 = por %p294, %p295
      %p298 = scmp.ne.s32.totalorder %s283, %s297
      %p299 = scmp.eq.s32.totalorder %s37, 0
      %p300 = por %p298, %p299
      %s302 = sadd.s32 %s301, 1
      %p305 = scmp.eq.s32.totalorder %s31, 7
      %p306 = scmp.ne.s32.totalorder %s301, %s303
      %p307 = scmp.eq.s32.totalorder %s31, 0
      %p308 = por %p306, %p307
      %p309 = scmp.ne.s32.totalorder %s301, %s303
      %p310 = scmp.eq.s32.totalorder %s36, 7
      %p311 = por %p309, %p310
      %p312 = scmp.ne.s32.totalorder %s303, %s304
      %p313 = scmp.eq.s32.totalorder %s36, 0
      %p314 = por %p312, %p313
      %p315 = scmp.ne.s32.totalorder %s303, %s304
      %p316 = scmp.eq.s32.totalorder %s37, 7
      %p317 = por %p315, %p316
      %p319 = scmp.ne.s32.totalorder %s304, %s318
      %p320 = scmp.eq.s32.totalorder %s37, 0
      %p321 = por %p319, %p320
      %s323 = sadd.s32 %s322, 1
      %p326 = scmp.eq.s32.totalorder %s31, 7
      %p327 = scmp.ne.s32.totalorder %s322, %s324
      %p328 = scmp.eq.s32.totalorder %s31, 0
      %p329 = por %p327, %p328
      %p330 = scmp.ne.s32.totalorder %s322, %s324
      %p331 = scmp.eq.s32.totalorder %s36, 7
      %p332 = por %p330, %p331
      %p333 = scmp.ne.s32.totalorder %s324, %s325
      %p334 = scmp.eq.s32.totalorder %s36, 0
      %p335 = por %p333, %p334
      %p336 = scmp.ne.s32.totalorder %s324, %s325
      %p337 = scmp.eq.s32.totalorder %s37, 7
      %p338 = por %p336, %p337
      %p340 = scmp.ne.s32.totalorder %s325, %s339
      %p341 = scmp.eq.s32.totalorder %s37, 0
      %p342 = por %p340, %p341
      %s344 = sadd.s32 %s343, 1
      %p347 = scmp.eq.s32.totalorder %s31, 7
      %p348 = scmp.ne.s32.totalorder %s343, %s345
      %p349 = scmp.eq.s32.totalorder %s31, 0
      %p350 = por %p348, %p349
      %p351 = scmp.ne.s32.totalorder %s343, %s345
      %p352 = scmp.eq.s32.totalorder %s36, 7
      %p353 = por %p351, %p352
      %p354 = scmp.ne.s32.totalorder %s345, %s346
      %p355 = scmp.eq.s32.totalorder %s36, 0
      %p356 = por %p354, %p355
      %p357 = scmp.ne.s32.totalorder %s345, %s346
      %p358 = scmp.eq.s32.totalorder %s37, 7
      %p359 = por %p357, %p358
      %p361 = scmp.ne.s32.totalorder %s346, %s360
      %p362 = scmp.eq.s32.totalorder %s37, 0
      %p363 = por %p361, %p362
      %s365 = sadd.s32 %s364, 1
      %p368 = scmp.eq.s32.totalorder %s31, 7
      %p369 = scmp.ne.s32.totalorder %s364, %s366
      %p370 = scmp.eq.s32.totalorder %s31, 0
      %p371 = por %p369, %p370
      %p372 = scmp.ne.s32.totalorder %s364, %s366
      %p373 = scmp.eq.s32.totalorder %s36, 7
      %p374 = por %p372, %p373
      %p375 = scmp.ne.s32.totalorder %s366, %s367
      %p376 = scmp.eq.s32.totalorder %s36, 0
      %p377 = por %p375, %p376
      %p378 = scmp.ne.s32.totalorder %s366, %s367
      %p379 = scmp.eq.s32.totalorder %s37, 7
      %p380 = por %p378, %p379
      %p382 = scmp.ne.s32.totalorder %s367, %s381
      %p383 = scmp.eq.s32.totalorder %s37, 0
      %p384 = por %p382, %p383
      %s386 = sadd.s32 %s385, 1
      %p389 = scmp.eq.s32.totalorder %s31, 7
      %p390 = scmp.ne.s32.totalorder %s385, %s387
      %p391 = scmp.eq.s32.totalorder %s31, 0
      %p392 = por %p390, %p391
      %p393 = scmp.ne.s32.totalorder %s385, %s387
      %p394 = scmp.eq.s32.totalorder %s36, 7
      %p395 = por %p393, %p394
      %p396 = scmp.ne.s32.totalorder %s387, %s388
      %p397 = scmp.eq.s32.totalorder %s36, 0
      %p398 = por %p396, %p397
      %p399 = scmp.ne.s32.totalorder %s387, %s388
      %p400 = scmp.eq.s32.totalorder %s37, 7
      %p401 = por %p399, %p400
      %p403 = scmp.ne.s32.totalorder %s388, %s402
      %p404 = scmp.eq.s32.totalorder %s37, 0
      %p405 = por %p403, %p404
      %s407 = sadd.s32 %s406, 1
      %p410 = scmp.eq.s32.totalorder %s31, 7
      %p411 = scmp.ne.s32.totalorder %s406, %s408
      %p412 = scmp.eq.s32.totalorder %s31, 0
      %p413 = por %p411, %p412
      %p414 = scmp.ne.s32.totalorder %s406, %s408
      %p415 = scmp.eq.s32.totalorder %s36, 7
      %p416 = por %p414, %p415
      %p417 = scmp.ne.s32.totalorder %s408, %s409
      %p418 = scmp.eq.s32.totalorder %s36, 0
      %p419 = por %p417, %p418
      %p420 = scmp.ne.s32.totalorder %s408, %s409
      %p421 = scmp.eq.s32.totalorder %s37, 7
      %p422 = por %p420, %p421
      %p424 = scmp.ne.s32.totalorder %s409, %s423
      %p425 = scmp.eq.s32.totalorder %s37, 0
      %p426 = por %p424, %p425
      %s428 = sadd.s32 %s427, 1
      %p431 = scmp.eq.s32.totalorder %s31, 7
      %p432 = scmp.ne.s32.totalorder %s427, %s429
      %p433 = scmp.eq.s32.totalorder %s31, 0
      %p434 = por %p432, %p433
      %p435 = scmp.ne.s32.totalorder %s427, %s429
      %p436 = scmp.eq.s32.totalorder %s36, 7
      %p437 = por %p435, %p436
      %p438 = scmp.ne.s32.totalorder %s429, %s430
      %p439 = scmp.eq.s32.totalorder %s36, 0
      %p440 = por %p438, %p439
      %p441 = scmp.ne.s32.totalorder %s429, %s430
      %p442 = scmp.eq.s32.totalorder %s37, 7
      %p443 = por %p441, %p442
      %p445 = scmp.ne.s32.totalorder %s430, %s444
      %p446 = scmp.eq.s32.totalorder %s37, 0
      %p447 = por %p445, %p446
      %s448 = ssub.s32 %s38, %s50
      %p449 = scmp.eq.s32.totalorder %s448, 0
      %s451 = sadd.s32 %s450, 1
      %s452 = scalar_select %p449, %s450, %s451
      %p455 = pneg %p449
      %p456 = scmp.eq.s32.totalorder %s31, 7
      %p457 = por %p455, %p456
      %p458 = scmp.ne.s32.totalorder %s450, %s453
      %p459 = scmp.eq.s32.totalorder %s31, 0
      %p460 = por %p458, %p459
      %p461 = scmp.ne.s32.totalorder %s450, %s453
      %p462 = scmp.eq.s32.totalorder %s36, 7
      %p463 = por %p461, %p462
      %p464 = scmp.ne.s32.totalorder %s453, %s454
      %p465 = scmp.eq.s32.totalorder %s36, 0
      %p466 = por %p464, %p465
      %p467 = scmp.ne.s32.totalorder %s453, %s454
      %p468 = scmp.eq.s32.totalorder %s37, 7
      %p469 = por %p467, %p468
      %p471 = scmp.ne.s32.totalorder %s454, %s470
      %p472 = scmp.eq.s32.totalorder %s37, 0
      %p473 = por %p471, %p472
      %s474 = ssub.s32 %s38, %s50
      %s475 = ssub.s32 %s39, %s46
      %s476 = sor.u32 %s474, %s475
      %p477 = scmp.eq.s32.totalorder %s476, 0
      %s479 = sadd.s32 %s478, 1
      %s480 = scalar_select %p477, %s478, %s479
      %p483 = pneg %p477
      %p484 = scmp.eq.s32.totalorder %s31, 7
      %p485 = por %p483, %p484
      %p486 = scmp.ne.s32.totalorder %s478, %s481
      %p487 = scmp.eq.s32.totalorder %s31, 0
      %p488 = por %p486, %p487
      %p489 = scmp.ne.s32.totalorder %s478, %s481
      %p490 = scmp.eq.s32.totalorder %s36, 7
      %p491 = por %p489, %p490
      %p492 = scmp.ne.s32.totalorder %s481, %s482
      %p493 = scmp.eq.s32.totalorder %s36, 0
      %p494 = por %p492, %p493
      %p495 = scmp.ne.s32.totalorder %s481, %s482
      %p496 = scmp.eq.s32.totalorder %s37, 7
      %p497 = por %p495, %p496
      %p499 = scmp.ne.s32.totalorder %s482, %s498
      %p500 = scmp.eq.s32.totalorder %s37, 0
      %p501 = por %p499, %p500
      %p502 = scmp.le.s32.totalorder 1, %s31
      %p503 = scmp.lt.s32.totalorder %s31, 9
      %p504 = pnand %p502, %p503
      %p505 = pneg %p504
      // Predicated region
      $region9: #{tpu_custom_call.1} parent=5 // pred_check
        _
      $region10: #{tpu_custom_call.1} parent=5 // pred_check_branch
        %507 = sbr.rel (%p504) target = $region12
      $region11: #{tpu_custom_call.1} parent=5 // pred_region
        %s508 = ssub.s32 %s31, 1
        // Predicated region
        $region13: #{tpu_custom_call.1} parent=11 // pred_check
          %p509 = pneg %p272
        $region14: #{tpu_custom_call.1} parent=11 // pred_check_branch
          %511 = sbr.rel (%p509) target = $region16
        $region15: #{tpu_custom_call.1} parent=11 // pred_region
          _
        $region16: #{tpu_custom_call.1} parent=11 // pred_fallthru
          _
        // Predicated region
        $region17: #{tpu_custom_call.1} parent=11 // pred_check
          %p512 = pneg %p293
        $region18: #{tpu_custom_call.1} parent=11 // pred_check_branch
          %514 = sbr.rel (%p512) target = $region20
        $region19: #{tpu_custom_call.1} parent=11 // pred_region
          _
        $region20: #{tpu_custom_call.1} parent=11 // pred_fallthru
          _
        // Predicated region
        $region21: #{tpu_custom_call.1} parent=11 // pred_check
          %p515 = pneg %p314
        $region22: #{tpu_custom_call.1} parent=11 // pred_check_branch
          %517 = sbr.rel (%p515) target = $region24
        $region23: #{tpu_custom_call.1} parent=11 // pred_region
          _
        $region24: #{tpu_custom_call.1} parent=11 // pred_fallthru
          _
        // Predicated region
        $region25: #{tpu_custom_call.1} parent=11 // pred_check
          %p518 = pneg %p335
        $region26: #{tpu_custom_call.1} parent=11 // pred_check_branch
          %520 = sbr.rel (%p518) target = $region28
        $region27: #{tpu_custom_call.1} parent=11 // pred_region
          _
        $region28: #{tpu_custom_call.1} parent=11 // pred_fallthru
          _
        // Predicated region
        $region29: #{tpu_custom_call.1} parent=11 // pred_check
          %p521 = pneg %p356
        $region30: #{tpu_custom_call.1} parent=11 // pred_check_branch
          %523 = sbr.rel (%p521) target = $region32
        $region31: #{tpu_custom_call.1} parent=11 // pred_region
          _
        $region32: #{tpu_custom_call.1} parent=11 // pred_fallthru
          _
        // Predicated region
        $region33: #{tpu_custom_call.1} parent=11 // pred_check
          %p524 = pneg %p377
        $region34: #{tpu_custom_call.1} parent=11 // pred_check_branch
          %526 = sbr.rel (%p524) target = $region36
        $region35: #{tpu_custom_call.1} parent=11 // pred_region
          _
        $region36: #{tpu_custom_call.1} parent=11 // pred_fallthru
          _
        // Predicated region
        $region37: #{tpu_custom_call.1} parent=11 // pred_check
          %p527 = pneg %p398
        $region38: #{tpu_custom_call.1} parent=11 // pred_check_branch
          %529 = sbr.rel (%p527) target = $region40
        $region39: #{tpu_custom_call.1} parent=11 // pred_region
          _
        $region40: #{tpu_custom_call.1} parent=11 // pred_fallthru
          _
        // Predicated region
        $region41: #{tpu_custom_call.1} parent=11 // pred_check
          %p530 = pneg %p419
        $region42: #{tpu_custom_call.1} parent=11 // pred_check_branch
          %532 = sbr.rel (%p530) target = $region44
        $region43: #{tpu_custom_call.1} parent=11 // pred_region
          _
        $region44: #{tpu_custom_call.1} parent=11 // pred_fallthru
          _
        // Predicated region
        $region45: #{tpu_custom_call.1} parent=11 // pred_check
          %p533 = pneg %p440
        $region46: #{tpu_custom_call.1} parent=11 // pred_check_branch
          %535 = sbr.rel (%p533) target = $region48
        $region47: #{tpu_custom_call.1} parent=11 // pred_region
          _
        $region48: #{tpu_custom_call.1} parent=11 // pred_fallthru
          _
      $region12: #{tpu_custom_call.1} parent=5 // pred_fallthru
        _
      %p536 = scmp.lt.s32.totalorder %s31, 8
      // Predicated region
      $region49: #{tpu_custom_call.1} parent=5 // pred_check
        %p537 = pneg %p536
      $region50: #{tpu_custom_call.1} parent=5 // pred_check_branch
        %539 = sbr.rel (%p537) target = $region52
      $region51: #{tpu_custom_call.1} parent=5 // pred_region
        // Predicated region
        $region53: #{tpu_custom_call.1} parent=51 // pred_check
          %p540 = pneg %p63
        $region54: #{tpu_custom_call.1} parent=51 // pred_check_branch
          %542 = sbr.rel (%p540) target = $region56
        $region55: #{tpu_custom_call.1} parent=51 // pred_region
          %p543 = scmp.lt.s32.totalorder %s38, 1
          %s544 = scalar_select %p543, %s38, 1
          %s545 = smul.addr %s544, 8
          %s546 = scalar_lea.vmem %s0, %s545
        $region56: #{tpu_custom_call.1} parent=51 // pred_fallthru
          _
        // Predicated region
        $region57: #{tpu_custom_call.1} parent=51 // pred_check
          %p547 = pneg %p89
        $region58: #{tpu_custom_call.1} parent=51 // pred_check_branch
          %549 = sbr.rel (%p547) target = $region60
        $region59: #{tpu_custom_call.1} parent=51 // pred_region
          %p550 = scmp.lt.s32.totalorder %s39, 3
          %s551 = scalar_select %p550, %s39, 3
          %s552 = smul.addr %s551, 4
          %s553 = smul.addr %s552, 4
          %s554 = scalar_lea.vmem %s1, %s553
        $region60: #{tpu_custom_call.1} parent=51 // pred_fallthru
          _
        // Predicated region
        $region61: #{tpu_custom_call.1} parent=51 // pred_check
          %p555 = pneg %p115
        $region62: #{tpu_custom_call.1} parent=51 // pred_check_branch
          %557 = sbr.rel (%p555) target = $region64
        $region63: #{tpu_custom_call.1} parent=51 // pred_region
          %p558 = scmp.lt.s32.totalorder %s39, 3
          %s559 = scalar_select %p558, %s39, 3
          %s560 = scalar_lea.vmem %s2, %s559
        $region64: #{tpu_custom_call.1} parent=51 // pred_fallthru
          _
        // Predicated region
        $region65: #{tpu_custom_call.1} parent=51 // pred_check
          %p561 = pneg %p141
        $region66: #{tpu_custom_call.1} parent=51 // pred_check_branch
          %563 = sbr.rel (%p561) target = $region68
        $region67: #{tpu_custom_call.1} parent=51 // pred_region
          %p564 = scmp.lt.s32.totalorder %s39, 3
          %s565 = scalar_select %p564, %s39, 3
          %s566 = smul.addr %s565, 4
          %s567 = smul.addr %s566, 4
          %s568 = scalar_lea.vmem %s3, %s567
        $region68: #{tpu_custom_call.1} parent=51 // pred_fallthru
          _
        // Predicated region
        $region69: #{tpu_custom_call.1} parent=51 // pred_check
          %p569 = pneg %p167
        $region70: #{tpu_custom_call.1} parent=51 // pred_check_branch
          %571 = sbr.rel (%p569) target = $region72
        $region71: #{tpu_custom_call.1} parent=51 // pred_region
          %p572 = scmp.lt.s32.totalorder %s39, 3
          %s573 = scalar_select %p572, %s39, 3
          %s574 = scalar_lea.vmem %s4, %s573
        $region72: #{tpu_custom_call.1} parent=51 // pred_fallthru
          _
        // Predicated region
        $region73: #{tpu_custom_call.1} parent=51 // pred_check
          %p575 = pneg %p193
        $region74: #{tpu_custom_call.1} parent=51 // pred_check_branch
          %577 = sbr.rel (%p575) target = $region76
        $region75: #{tpu_custom_call.1} parent=51 // pred_region
          %p578 = scmp.lt.s32.totalorder %s39, 3
          %s579 = scalar_select %p578, %s39, 3
          %s580 = smul.addr %s579, 4
          %s581 = smul.addr %s580, 4
          %s582 = scalar_lea.vmem %s5, %s581
        $region76: #{tpu_custom_call.1} parent=51 // pred_fallthru
          _
        // Predicated region
        $region77: #{tpu_custom_call.1} parent=51 // pred_check
          %p583 = pneg %p219
        $region78: #{tpu_custom_call.1} parent=51 // pred_check_branch
          %585 = sbr.rel (%p583) target = $region80
        $region79: #{tpu_custom_call.1} parent=51 // pred_region
          %p586 = scmp.lt.s32.totalorder %s39, 3
          %s587 = scalar_select %p586, %s39, 3
          %s588 = scalar_lea.vmem %s6, %s587
        $region80: #{tpu_custom_call.1} parent=51 // pred_fallthru
          _
        // Predicated region
        $region81: #{tpu_custom_call.1} parent=51 // pred_check
          %p589 = pneg %p245
        $region82: #{tpu_custom_call.1} parent=51 // pred_check_branch
          %591 = sbr.rel (%p589) target = $region84
        $region83: #{tpu_custom_call.1} parent=51 // pred_region
          %p592 = scmp.lt.s32.totalorder %s39, 3
          %s593 = scalar_select %p592, %s39, 3
          %s594 = smul.addr %s593, 4
          %s595 = scalar_lea.vmem %s7, %s594
        $region84: #{tpu_custom_call.1} parent=51 // pred_fallthru
          _
      $region52: #{tpu_custom_call.1} parent=5 // pred_fallthru
        _
      %p596 = scmp.le.s32.totalorder 1, %s31
      %p597 = scmp.lt.s32.totalorder %s31, 9
      %p598 = pnand %p596, %p597
      %p599 = pneg %p598
      // Predicated region
      $region85: #{tpu_custom_call.1} parent=5 // pred_check
        _
      $region86: #{tpu_custom_call.1} parent=5 // pred_check_branch
        %601 = sbr.rel (%p598) target = $region88
      $region87: #{tpu_custom_call.1} parent=5 // pred_region
        %s602 = ssub.s32 %s31, 1
        %p603 = scmp.lt.s32.totalorder %s40, 1
        %s604 = scalar_select %p603, %s40, 1
        %s605 = smul.addr %s604, 8
        %s606 = scalar_lea.vmem %s0, %s605
        %p607 = pneg %p69
        %p608 = pneg %p66
        %p609 = scmp.lt.s32.totalorder %s41, 3
        %s610 = scalar_select %p609, %s41, 3
        %s611 = smul.addr %s610, 4
        %s612 = smul.addr %s611, 4
        %s613 = scalar_lea.vmem %s1, %s612
        %p614 = pneg %p95
        %p615 = pneg %p92
        %p616 = scmp.lt.s32.totalorder %s41, 3
        %s617 = scalar_select %p616, %s41, 3
        %s618 = scalar_lea.vmem %s2, %s617
        %p619 = pneg %p121
        %p620 = pneg %p118
        %p621 = scmp.lt.s32.totalorder %s41, 3
        %s622 = scalar_select %p621, %s41, 3
        %s623 = smul.addr %s622, 4
        %s624 = smul.addr %s623, 4
        %s625 = scalar_lea.vmem %s3, %s624
        %p626 = pneg %p147
        %p627 = pneg %p144
        %p628 = scmp.lt.s32.totalorder %s41, 3
        %s629 = scalar_select %p628, %s41, 3
        %s630 = scalar_lea.vmem %s4, %s629
        %p631 = pneg %p173
        %p632 = pneg %p170
        %p633 = scmp.lt.s32.totalorder %s41, 3
        %s634 = scalar_select %p633, %s41, 3
        %s635 = smul.addr %s634, 4
        %s636 = smul.addr %s635, 4
        %s637 = scalar_lea.vmem %s5, %s636
        %p638 = pneg %p199
        %p639 = pneg %p196
        %p640 = scmp.lt.s32.totalorder %s41, 3
        %s641 = scalar_select %p640, %s41, 3
        %s642 = scalar_lea.vmem %s6, %s641
        %p643 = pneg %p225
        %p644 = pneg %p222
        %p645 = scmp.lt.s32.totalorder %s41, 3
        %s646 = scalar_select %p645, %s41, 3
        %s647 = smul.addr %s646, 4
        %s648 = scalar_lea.vmem %s7, %s647
        %p649 = pneg %p251
        %p650 = pneg %p248
        %p651 = pneg %p272
        %p652 = pneg %p269
        %p653 = pneg %p293
        %p654 = pneg %p290
        %p655 = pneg %p314
        %p656 = pneg %p311
        %p657 = pneg %p335
        %p658 = pneg %p332
        %p659 = pneg %p356
        %p660 = pneg %p353
        %p661 = pneg %p377
        %p662 = pneg %p374
        %p663 = pneg %p398
        %p664 = pneg %p395
        %p665 = pneg %p419
        %p666 = pneg %p416
        %p667 = pneg %p440
        %p668 = pneg %p437
        %p669 = pneg %p466
        %p670 = pneg %p463
        %s671 = sand.u32 %s453, 1
        %s672 = scalar_lea.sflag [#allocation4], %s671
        %s673 = sand.u32 %s453, 1
        %s674 = smul.addr %s673, 8
        %s675 = scalar_lea.vmem [#allocation3], %s674
        %p676 = pneg %p494
        %p677 = pneg %p491
        %s678 = sand.u32 %s481, 1
        %s679 = scalar_lea.sflag [#allocation6], %s678
        %s680 = sand.u32 %s481, 1
        %s681 = smul.addr %s680, 8
        %s682 = scalar_lea.vmem [#allocation5], %s681
        %p683 = scmp.lt.s32.totalorder %s40, 1
        %s684 = scalar_select %p683, %s40, 1
        %s685 = smul.addr %s684, 8
        %s686 = scalar_lea.vmem %s0, %s685
        %p687 = scmp.lt.s32.totalorder %s41, 3
        %s688 = scalar_select %p687, %s41, 3
        %s689 = smul.addr %s688, 4
        %s690 = smul.addr %s689, 4
        %s691 = scalar_lea.vmem %s1, %s690
        %p692 = scmp.lt.s32.totalorder %s41, 3
        %s693 = scalar_select %p692, %s41, 3
        %s694 = scalar_lea.vmem %s2, %s693
        %p695 = scmp.lt.s32.totalorder %s41, 3
        %s696 = scalar_select %p695, %s41, 3
        %s697 = smul.addr %s696, 4
        %s698 = smul.addr %s697, 4
        %s699 = scalar_lea.vmem %s3, %s698
        %p700 = scmp.lt.s32.totalorder %s41, 3
        %s701 = scalar_select %p700, %s41, 3
        %s702 = scalar_lea.vmem %s4, %s701
        %p703 = scmp.lt.s32.totalorder %s41, 3
        %s704 = scalar_select %p703, %s41, 3
        %s705 = smul.addr %s704, 4
        %s706 = smul.addr %s705, 4
        %s707 = scalar_lea.vmem %s5, %s706
        %p708 = scmp.lt.s32.totalorder %s41, 3
        %s709 = scalar_select %p708, %s41, 3
        %s710 = scalar_lea.vmem %s6, %s709
        %p711 = scmp.lt.s32.totalorder %s41, 3
        %s712 = scalar_select %p711, %s41, 3
        %s713 = smul.addr %s712, 4
        %s714 = scalar_lea.vmem %s7, %s713
        %v716 = vld [vmem:[%s686] sm:$0xff]
        %v717 = vpack.c.bf16 %v716, %v716
        %v718 = vld [vmem:[%s691] sm:$0xf]
        %v719 = vld [vmem:[%s691 + $0x4] sm:$0xf]
        %v720 = vld [vmem:[%s691 + $0x8] sm:$0xf]
        %v721 = vld [vmem:[%s691 + $0xc] sm:$0xf]
        %v722 = vld [vmem:[%s694] sm:$0x1]
        %v724 = vperm.slane %v722, 0
        %v730 = vunpack.c.l.b16 %v718
        %v731 = vunpack.c.l.b16 %v719
        %v732 = vunpack.c.l.b16 %v720
        %v733 = vunpack.c.l.b16 %v721
        %v734 = vpack.c.b16 %v731, %v730
        %v735 = vpack.c.b16 %v733, %v732
        %vm738 = vcmask 261120
        %v740 = vsel %vm738, %v717, 0
        %742 = vmatpush.bf16.msra.mxu0 0
        %743 = vmatpush.bf16.msra.mxu0 0
        %744 = vmatpush.bf16.msra.mxu0 0
        %745 = vmatpush.bf16.msra.mxu0 0
        %746 = vmatpush.bf16.msra.mxu0 0
        %747 = vmatpush.bf16.msra.mxu0 0
        %748 = vmatpush.bf16.msra.mxu0 %v735
        %749 = vmatpush.bf16.msra.mxu0 %v734
        %750 = vmatmul.bf16.gmra.mxu0 %v740
        %v751 = vpop.f32.mrf.mxu0
        %v752 = vadd.f32 %v724, %v751
        %v753 = vpop.f32.mrf.mxu0
        %754 = vdwg.mxu0
        %v755 = vld [vmem:[%s699] sm:$0xf]
        %v756 = vld [vmem:[%s699 + $0x4] sm:$0xf]
        %v757 = vld [vmem:[%s699 + $0x8] sm:$0xf]
        %v758 = vld [vmem:[%s699 + $0xc] sm:$0xf]
        %v759 = vld [vmem:[%s702] sm:$0x1]
        %v761 = vperm.slane %v759, 0
        %v767 = vunpack.c.l.b16 %v755
        %v768 = vunpack.c.l.b16 %v756
        %v769 = vunpack.c.l.b16 %v757
        %v770 = vunpack.c.l.b16 %v758
        %v771 = vpack.c.b16 %v768, %v767
        %v772 = vpack.c.b16 %v770, %v769
        %775 = vmatpush.bf16.msra.mxu0 0
        %776 = vmatpush.bf16.msra.mxu0 0
        %777 = vmatpush.bf16.msra.mxu0 0
        %778 = vmatpush.bf16.msra.mxu0 0
        %779 = vmatpush.bf16.msra.mxu0 0
        %780 = vmatpush.bf16.msra.mxu0 0
        %781 = vmatpush.bf16.msra.mxu0 %v772
        %782 = vmatpush.bf16.msra.mxu0 %v771
        %783 = vmatmul.bf16.gmra.mxu0 %v740
        %v784 = vpop.f32.mrf.mxu0
        %v785 = vadd.f32 %v761, %v784
        %v786 = vpop.f32.mrf.mxu0
        %787 = vdwg.mxu0
        %v788 = vld [vmem:[%s707] sm:$0xf]
        %v789 = vld [vmem:[%s707 + $0x4] sm:$0xf]
        %v790 = vld [vmem:[%s707 + $0x8] sm:$0xf]
        %v791 = vld [vmem:[%s707 + $0xc] sm:$0xf]
        %v792 = vld [vmem:[%s710] sm:$0x1]
        %v794 = vperm.slane %v792, 0
        %v800 = vunpack.c.l.b16 %v788
        %v801 = vunpack.c.l.b16 %v789
        %v802 = vunpack.c.l.b16 %v790
        %v803 = vunpack.c.l.b16 %v791
        %v804 = vpack.c.b16 %v801, %v800
        %v805 = vpack.c.b16 %v803, %v802
        %808 = vmatpush.bf16.msra.mxu0 0
        %809 = vmatpush.bf16.msra.mxu0 0
        %810 = vmatpush.bf16.msra.mxu0 0
        %811 = vmatpush.bf16.msra.mxu0 0
        %812 = vmatpush.bf16.msra.mxu0 0
        %813 = vmatpush.bf16.msra.mxu0 0
        %814 = vmatpush.bf16.msra.mxu0 %v805
        %815 = vmatpush.bf16.msra.mxu0 %v804
        %816 = vmatmul.bf16.gmra.mxu0 %v740
        %v817 = vpop.f32.mrf.mxu0
        %v818 = vadd.f32 %v794, %v817
        %v819 = vpop.f32.mrf.mxu0
        %820 = vdwg.mxu0
        %v821 = vpack.c.bf16 %v752, %v752
        %v822 = vpack.c.bf16 %v785, %v785
        %vm823 = vcmask 64512
        %v825 = vsel %vm823, %v821, 0
        %v828 = vsel %vm823, %v822, 0
        %830 = vmatpush.bf16.xpose.msra.mxu0 0
        %831 = vmatpush.bf16.xpose.msra.mxu0 0
        %832 = vmatpush.bf16.xpose.msra.mxu0 0
        %833 = vmatpush.bf16.xpose.msra.mxu0 0
        %834 = vmatpush.bf16.xpose.msra.mxu0 0
        %835 = vmatpush.bf16.xpose.msra.mxu0 0
        %836 = vmatpush.bf16.xpose.msra.mxu0 0
        %837 = vmatpush.bf16.xpose.msra.mxu0 %v828
        %838 = vmatmul.bf16.gmra.mxu0 %v825
        %v839 = vpop.f32.mrf.mxu0
        %v840 = vadd.f32 0.0, %v839
        %v841 = vpop.f32.mrf.mxu0
        %842 = vdwg.mxu0
        %v843 = vmul.f32 %v840, 0.35355338
        %v844 = vsel %vm823, %v843, -inf
        %845 = vmax.xlane.f32.xlu0 %v844
        %v846 = vpop.xlane.xlu0 %845
        %v847 = vsub.f32 %v843, %v846
        %v848 = vmul.f32 %v847, 1.442695
        %v849 = vpow.pop %v848
        %v850 = vsel %vm823, %v849, 0.0
        %851 = vadd.xlane.f32.xlu0 %v850
        %v852 = vpop.xlane.xlu0 %851
        %v853 = vrcp.pop %v852
        %v854 = vmul.f32 %v849, %v853
        %855 = vst.msk [vmem:[%s682] sm:$0xff] %vm823, %v854
        %v856 = vpack.c.bf16 %v854, %v854
        %v857 = vpack.c.bf16 %v818, %v818
        %v859 = vsel %vm823, %v856, 0
        %vm861 = vcmask 1043456
        %v863 = vsel %vm861, %v857, 0
        %865 = vmatpush.bf16.msra.mxu0 0
        %866 = vmatpush.bf16.msra.mxu0 0
        %867 = vmatpush.bf16.msra.mxu0 0
        %868 = vmatpush.bf16.msra.mxu0 0
        %869 = vmatpush.bf16.msra.mxu0 0
        %870 = vmatpush.bf16.msra.mxu0 0
        %871 = vmatpush.bf16.msra.mxu0 0
        %872 = vmatpush.bf16.msra.mxu0 %v863
        %873 = vmatmul.bf16.gmra.mxu0 %v859
        %v874 = vpop.f32.mrf.mxu0
        %v875 = vadd.f32 0.0, %v874
        %v876 = vpop.f32.mrf.mxu0
        %877 = vdwg.mxu0
        %v878 = vpack.c.bf16 %v875, %v875
        %v879 = vld [vmem:[%s714] sm:$0xf]
        %v881 = vsel %vm823, %v878, 0
        %v884 = vsel %vm861, %v879, 0
        %886 = vmatpush.bf16.msra.mxu0 0
        %887 = vmatpush.bf16.msra.mxu0 0
        %888 = vmatpush.bf16.msra.mxu0 0
        %889 = vmatpush.bf16.msra.mxu0 0
        %890 = vmatpush.bf16.msra.mxu0 0
        %891 = vmatpush.bf16.msra.mxu0 0
        %892 = vmatpush.bf16.msra.mxu0 0
        %893 = vmatpush.bf16.msra.mxu0 %v884
        %894 = vmatmul.bf16.gmra.mxu0 %v881
        %v895 = vpop.f32.mrf.mxu0
        %v896 = vadd.f32 0.0, %v895
        %v897 = vpop.f32.mrf.mxu0
        %898 = vdwg.mxu0
        %p899 = scmp.eq.s32.totalorder %s41, 0
        // Predicated region
        $region89: #{tpu_custom_call.1} parent=87 // pred_check
          %p900 = pneg %p899
        $region90: #{tpu_custom_call.1} parent=87 // pred_check_branch
          %902 = sbr.rel (%p900) target = $region92
        $region91: #{tpu_custom_call.1} parent=87 // pred_region
          %903 = vst.msk [vmem:[#allocation2] sm:$0xff] %vm738, 0.0
        $region92: #{tpu_custom_call.1} parent=87 // pred_fallthru
          _
        %v904 = vld [vmem:[#allocation2] sm:$0xff]
        %v905 = vadd.f32 %v904, %v896
        %906 = vst.msk [vmem:[#allocation2] sm:$0xff] %vm738, %v905
        %p907 = scmp.eq.s32.totalorder %s41, 3
        // Predicated region
        $region93: #{tpu_custom_call.1} parent=87 // pred_check
          %p908 = pneg %p907
        $region94: #{tpu_custom_call.1} parent=87 // pred_check_branch
          %910 = sbr.rel (%p908) target = $region96
        $region95: #{tpu_custom_call.1} parent=87 // pred_region
          %v911 = vld [vmem:[%s686] sm:$0xff]
          %v912 = vld [vmem:[#allocation2] sm:$0xff]
          %v913 = vld [vmem:[%s8] sm:$0x1]
          %v915 = vperm.slane %v913, 0
          %v917 = vadd.f32 %v912, %v915
          %v918 = vadd.f32 %v911, %v917
          %v919 = vsel %vm738, %v918, 0.0
          %920 = vadd.xlane.f32.xlu0 %v919
          %v921 = vpop.xlane.xlu0 %920
          %v922 = vrcp.pop 32.0
          %v923 = vmul.f32 32.0, %v922
          %v924 = vsub.f32 1.0, %v923
          %v925 = vmul.f32 %v922, %v924
          %v926 = vadd.f32 %v922, %v925
          %vm927 = vweird.f32 %v922
          %v928 = vsel %vm927, %v922, %v926
          %v929 = vmul.f32 %v921, %v928
          %v930 = vsub.f32 %v918, %v929
          %v931 = vmul.f32 %v930, %v930
          %v932 = vsel %vm738, %v931, 0.0
          %933 = vadd.xlane.f32.xlu0 %v932
          %v934 = vpop.xlane.xlu0 %933
          %v935 = vmul.f32 %v934, %v928
          %v936 = vadd.f32 %v935, 1e-05
          %v937 = vrsqrt.pop %v936
          %v938 = vmul.f32 %v937, %v936
          %v939 = vmul.f32 %v938, %v937
          %v940 = vmul.f32 0.5, %v939
          %v941 = vsub.f32 1.5, %v940
          %v942 = vmul.f32 %v937, %v941
          %vm943 = vweird.f32 %v936
          %vm944 = vweird.f32 %v937
          %vm945 = vmor %vm943, %vm944
          %v946 = vsel %vm945, %v937, %v942
          %v947 = vmul.f32 %v930, %v946
          %v948 = vld [vmem:[%s13] sm:$0x1]
          %v950 = vperm.slane %v948, 0
          %v952 = vmul.f32 %v947, %v950
          %v953 = vld [vmem:[%s14] sm:$0x1]
          %v955 = vperm.slane %v953, 0
          %v957 = vadd.f32 %v952, %v955
          %v958 = vpack.c.bf16 %v957, %v957
          %v959 = vld [vmem:[%s9] sm:$0xf]
          %v960 = vld [vmem:[%s9 + $0x4] sm:$0xf]
          %v961 = vld [vmem:[%s9 + $0x8] sm:$0xf]
          %v962 = vld [vmem:[%s9 + $0xc] sm:$0xf]
          %v963 = vld [vmem:[%s10] sm:$0x1]
          %v965 = vperm.slane %v963, 0
          %v971 = vunpack.c.l.b16 %v959
          %v972 = vunpack.c.l.b16 %v960
          %v973 = vunpack.c.l.b16 %v961
          %v974 = vunpack.c.l.b16 %v962
          %v975 = vpack.c.b16 %v972, %v971
          %v976 = vpack.c.b16 %v974, %v973
          %v980 = vsel %vm738, %v958, 0
          %982 = vmatpush.bf16.msra.mxu0 0
          %983 = vmatpush.bf16.msra.mxu0 0
          %984 = vmatpush.bf16.msra.mxu0 0
          %985 = vmatpush.bf16.msra.mxu0 0
          %986 = vmatpush.bf16.msra.mxu0 0
          %987 = vmatpush.bf16.msra.mxu0 0
          %988 = vmatpush.bf16.msra.mxu0 %v976
          %989 = vmatpush.bf16.msra.mxu0 %v975
          %990 = vmatmul.bf16.gmra.mxu0 %v980
          %v991 = vpop.f32.mrf.mxu0
          %v992 = vadd.f32 %v965, %v991
          %v993 = vpop.f32.mrf.mxu0
          %994 = vdwg.mxu0
          %v995 = vmax.f32 %v992, 0.0
          %v996 = vpack.c.bf16 %v995, %v995
          %v997 = vld [vmem:[%s11] sm:$0xf]
          %v998 = vld [vmem:[%s11 + $0x4] sm:$0xf]
          %v999 = vld [vmem:[%s11 + $0x8] sm:$0xf]
          %v1000 = vld [vmem:[%s11 + $0xc] sm:$0xf]
          %v1001 = vld [vmem:[%s11 + $0x10] sm:$0xf]
          %v1002 = vld [vmem:[%s11 + $0x14] sm:$0xf]
          %v1003 = vld [vmem:[%s11 + $0x18] sm:$0xf]
          %v1004 = vld [vmem:[%s11 + $0x1c] sm:$0xf]
          %v1005 = vld [vmem:[%s11 + $0x20] sm:$0xf]
          %v1006 = vld [vmem:[%s11 + $0x24] sm:$0xf]
          %v1007 = vld [vmem:[%s11 + $0x28] sm:$0xf]
          %v1008 = vld [vmem:[%s11 + $0x2c] sm:$0xf]
          %v1009 = vld [vmem:[%s11 + $0x30] sm:$0xf]
          %v1010 = vld [vmem:[%s11 + $0x34] sm:$0xf]
          %v1011 = vld [vmem:[%s11 + $0x38] sm:$0xf]
          %v1012 = vld [vmem:[%s11 + $0x3c] sm:$0xf]
          %v1013 = vld [vmem:[%s12] sm:$0x1]
          %v1015 = vperm.slane %v1013, 0
          %v1033 = vunpack.c.l.b16 %v997
          %v1034 = vunpack.c.l.b16 %v998
          %v1035 = vunpack.c.l.b16 %v999
          %v1036 = vunpack.c.l.b16 %v1000
          %v1037 = vunpack.c.l.b16 %v1001
          %v1038 = vunpack.c.l.b16 %v1002
          %v1039 = vunpack.c.l.b16 %v1003
          %v1040 = vunpack.c.l.b16 %v1004
          %v1041 = vunpack.c.l.b16 %v1005
          %v1042 = vunpack.c.l.b16 %v1006
          %v1043 = vunpack.c.l.b16 %v1007
          %v1044 = vunpack.c.l.b16 %v1008
          %v1045 = vunpack.c.l.b16 %v1009
          %v1046 = vunpack.c.l.b16 %v1010
          %v1047 = vunpack.c.l.b16 %v1011
          %v1048 = vunpack.c.l.b16 %v1012
          %v1049 = vpack.c.b16 %v1034, %v1033
          %v1050 = vpack.c.b16 %v1036, %v1035
          %v1051 = vpack.c.b16 %v1038, %v1037
          %v1052 = vpack.c.b16 %v1040, %v1039
          %v1053 = vpack.c.b16 %v1042, %v1041
          %v1054 = vpack.c.b16 %v1044, %v1043
          %v1055 = vpack.c.b16 %v1046, %v1045
          %v1056 = vpack.c.b16 %v1048, %v1047
          %1065 = vmatpush.bf16.msra.mxu0 %v1056
          %1066 = vmatpush.bf16.msra.mxu0 %v1055
          %1067 = vmatpush.bf16.msra.mxu0 %v1054
          %1068 = vmatpush.bf16.msra.mxu0 %v1053
          %1069 = vmatpush.bf16.msra.mxu0 %v1052
          %1070 = vmatpush.bf16.msra.mxu0 %v1051
          %1071 = vmatpush.bf16.msra.mxu0 %v1050
          %1072 = vmatpush.bf16.msra.mxu0 %v1049
          %1073 = vmatmul.bf16.gmra.mxu0 %v996
          %v1074 = vpop.f32.mrf.mxu0
          %v1075 = vadd.f32 %v1015, %v1074
          %v1076 = vpop.f32.mrf.mxu0
          %1077 = vdwg.mxu0
          %v1078 = vadd.f32 %v957, %v1075
          %v1079 = vsel %vm738, %v1078, 0.0
          %1080 = vadd.xlane.f32.xlu0 %v1079
          %v1081 = vpop.xlane.xlu0 %1080
          %v1082 = vmul.f32 %v1081, %v928
          %v1083 = vsub.f32 %v1078, %v1082
          %v1084 = vmul.f32 %v1083, %v1083
          %v1085 = vsel %vm738, %v1084, 0.0
          %1086 = vadd.xlane.f32.xlu0 %v1085
          %v1087 = vpop.xlane.xlu0 %1086
          %v1088 = vmul.f32 %v1087, %v928
          %v1089 = vadd.f32 %v1088, 1e-05
          %v1090 = vrsqrt.pop %v1089
          %v1091 = vmul.f32 %v1090, %v1089
          %v1092 = vmul.f32 %v1091, %v1090
          %v1093 = vmul.f32 0.5, %v1092
          %v1094 = vsub.f32 1.5, %v1093
          %v1095 = vmul.f32 %v1090, %v1094
          %vm1096 = vweird.f32 %v1089
          %vm1097 = vweird.f32 %v1090
          %vm1098 = vmor %vm1096, %vm1097
          %v1099 = vsel %vm1098, %v1090, %v1095
          %v1100 = vmul.f32 %v1083, %v1099
          %v1101 = vld [vmem:[%s15] sm:$0x1]
          %v1103 = vperm.slane %v1101, 0
          %v1105 = vmul.f32 %v1100, %v1103
          %v1106 = vld [vmem:[%s16] sm:$0x1]
          %v1108 = vperm.slane %v1106, 0
          %v1110 = vadd.f32 %v1105, %v1108
          %1111 = vst.msk [vmem:[%s675] sm:$0xff] %vm738, %v1110
        $region96: #{tpu_custom_call.1} parent=87 // pred_fallthru
          _
        %s1112 = sand.u32 %s453, 1
        %s1113 = scalar_lea.sflag [#allocation4], %s1112
        %s1114 = sand.u32 %s453, 1
        %s1115 = smul.addr %s1114, 8
        %s1116 = scalar_lea.vmem [#allocation3], %s1115
        %s1117 = sand.u32 %s481, 1
        %s1118 = scalar_lea.sflag [#allocation6], %s1117
        %s1119 = sand.u32 %s481, 1
        %s1120 = smul.addr %s1119, 8
        %s1121 = scalar_lea.vmem [#allocation5], %s1120
        // Predicated region
        $region97: #{tpu_custom_call.1} parent=87 // pred_check
          %p1122 = pneg %p463
        $region98: #{tpu_custom_call.1} parent=87 // pred_check_branch
          %1124 = sbr.rel (%p1122) target = $region100
        $region99: #{tpu_custom_call.1} parent=87 // pred_region
          %1126 = vsyncadd %s1113, 0
          %s1127 = smul.addr %s40, 8
          %s1128 = scalar_lea.hbm %s17, %s1127
          %s1130 = sshll.u32 %s1116, 4
          %s1131 = int_to_ptr.vmem [resolvable:$true] %s1130
          %s1132 = sshll.u32 %s1128, 4
          %s1133 = int_to_ptr.hbm [resolvable:$true] %s1132
          %1135 = dma.vmem_to_hbm [thread:$0]  %s1131, 128, %s1133, %s1113
        $region100: #{tpu_custom_call.1} parent=87 // pred_fallthru
          _
        // Predicated region
        $region101: #{tpu_custom_call.1} parent=87 // pred_check
          %p1136 = pneg %p491
        $region102: #{tpu_custom_call.1} parent=87 // pred_check_branch
          %1138 = sbr.rel (%p1136) target = $region104
        $region103: #{tpu_custom_call.1} parent=87 // pred_region
          %1140 = vsyncadd %s1118, 0
          %s1141 = smul.addr %s40, 4
          %s1142 = sadd.s32 %s41, %s1141
          %s1143 = smul.addr %s1142, 8
          %s1144 = scalar_lea.hbm %s18, %s1143
          %s1146 = sshll.u32 %s1121, 4
          %s1147 = int_to_ptr.vmem [resolvable:$true] %s1146
          %s1148 = sshll.u32 %s1144, 4
          %s1149 = int_to_ptr.hbm [resolvable:$true] %s1148
          %1151 = dma.vmem_to_hbm [thread:$0]  %s1147, 128, %s1149, %s1118
        $region104: #{tpu_custom_call.1} parent=87 // pred_fallthru
          _
      $region88: #{tpu_custom_call.1} parent=5 // pred_fallthru
        _
      %p1152 = scmp.le.s32.totalorder 2, %s31
      // Predicated region
      $region105: #{tpu_custom_call.1} parent=5 // pred_check
        %p1153 = pneg %p1152
      $region106: #{tpu_custom_call.1} parent=5 // pred_check_branch
        %1155 = sbr.rel (%p1153) target = $region108
      $region107: #{tpu_custom_call.1} parent=5 // pred_region
        %s1156 = ssub.s32 %s31, 2
        // Predicated region
        $region109: #{tpu_custom_call.1} parent=107 // pred_check
          %p1157 = pneg %p469
        $region110: #{tpu_custom_call.1} parent=107 // pred_check_branch
          %1159 = sbr.rel (%p1157) target = $region112
        $region111: #{tpu_custom_call.1} parent=107 // pred_region
          %s1160 = sand.u32 %s454, 1
          %s1161 = scalar_lea.sflag [#allocation4], %s1160
          %s1162 = sand.u32 %s454, 1
          %s1163 = smul.addr %s1162, 8
          %s1164 = scalar_lea.vmem [#allocation3], %s1163
          %1166 = dma.done %s1161, 128
        $region112: #{tpu_custom_call.1} parent=107 // pred_fallthru
          _
        // Predicated region
        $region113: #{tpu_custom_call.1} parent=107 // pred_check
          %p1167 = pneg %p497
        $region114: #{tpu_custom_call.1} parent=107 // pred_check_branch
          %1169 = sbr.rel (%p1167) target = $region116
        $region115: #{tpu_custom_call.1} parent=107 // pred_region
          %s1170 = sand.u32 %s482, 1
          %s1171 = scalar_lea.sflag [#allocation6], %s1170
          %s1172 = sand.u32 %s482, 1
          %s1173 = smul.addr %s1172, 8
          %s1174 = scalar_lea.vmem [#allocation5], %s1173
          %1176 = dma.done %s1171, 128
        $region116: #{tpu_custom_call.1} parent=107 // pred_fallthru
          _
      $region108: #{tpu_custom_call.1} parent=5 // pred_fallthru
        _
    $region6: #{tpu_custom_call.1} parent=1 // loop_footer
      %s35 = sadd.s32 1, %s31
    $region7: #{tpu_custom_call.1} parent=1 // loop_footer_branch
      %30 = sbr.rel target = $region3
    $region8: #{tpu_custom_call.1} parent=1 // loop_exit
      _
    %1177 = vsyncpa [#allocation4], 1
    %s1178 = scalar_lea.sflag [#allocation4], 1
    %1179 = vsyncpa %s1178, 1
    %1180 = vsyncpa [#allocation6], 1
    %s1181 = scalar_lea.sflag [#allocation6], 1
    %1182 = vsyncpa %s1181, 1

</llo_original>
